<compile_context>
chip_gen: v7x
topology: tpu7x:2x2x1
jax: 0.10.0
libtpu: 0.0.40
codegen_flags: <defaults>
</compile_context>

<pallas_src>
import functools

import jax
import jax.numpy as jnp
from jax.experimental import pallas as pl
from jax.experimental.pallas import tpu as pltpu


def _com_class_mean_kernel(img_ref, gt_ref, out_ref, *, classes):
    # img_ref: (NB, TC, HW) f32, gt_ref: (NB, 1, HW) i32, out_ref: (NB, TC, HW)
    img = img_ref[...].astype(jnp.float32)              # (NB, TC, HW)
    gt = gt_ref[...]                                    # (NB, 1, HW) int32
    nb, _, hw = img.shape

    # One-hot encoding of gt over the class axis, built once per block
    # (independent of the channel tile): (NB, classes, HW).
    class_ids = jax.lax.broadcasted_iota(jnp.int32, (1, classes, hw), 1)
    onehot = (class_ids == gt).astype(jnp.float32)

    # Per-class pixel counts via a tiny MXU contraction; gives (NB, 1, classes)
    # directly in the layout needed below (no transpose / cross-lane shuffle).
    ones_row = jnp.ones((nb, 1, hw), dtype=jnp.float32)
    counts = jnp.einsum(
        "nox,nkx->nok", ones_row, onehot,
        preferred_element_type=jnp.float32,
        precision=jax.lax.Precision.HIGHEST)            # (NB, 1, classes)

    # Per-channel, per-class sums: contract the lane-dense HW axis on the MXU.
    sums = jnp.einsum(
        "ncx,nkx->nck", img, onehot,
        preferred_element_type=jnp.float32,
        precision=jax.lax.Precision.HIGHEST)            # (NB, TC, classes)

    inv_counts = 1.0 / (counts + 1e-8)                  # (NB, 1, classes)
    means = sums * inv_counts                           # (NB, TC, classes)

    # Scatter the class means back onto pixels: second MXU matmul. Each output
    # pixel picks exactly one mean (one-hot column), so HIGHEST precision makes
    # this an exact select.
    out_cm = jnp.einsum(
        "nck,nkx->ncx", means, onehot,
        preferred_element_type=jnp.float32,
        precision=jax.lax.Precision.HIGHEST)            # (NB, TC, HW)

    # Pixels whose label is outside [0, classes) are never touched by the
    # PyTorch loop -> pass them through unchanged.
    in_range = jnp.logical_and(gt >= 0, gt < classes)   # (NB, 1, HW)
    out = jnp.where(in_range, out_cm, img)

    out_ref[...] = out.astype(out_ref.dtype)


def _largest_divisor_leq(n, cap):
    cap = max(1, min(n, int(cap)))
    for d in range(cap, 0, -1):
        if n % d == 0:
            return d
    return 1


def _pick_channel_tile(C, max_tc):
    """Largest divisor of C that fits; prefer sublane-aligned (mult. of 8)."""
    if C <= max_tc:
        return C
    best = None
    for d in range(min(C, int(max_tc)), 0, -1):
        if C % d == 0:
            if d % 8 == 0:
                return d
            if best is None:
                best = d
    return best if best is not None else C


def com_class_mean(img, gt, classes):
    """img: (N, C, H, W) float32, gt: (N, 1, H, W) int labels."""
    N, C, H, W = img.shape
    HW = H * W
    img_f = img.reshape(N, C, HW)
    gt_f = gt.reshape(N, 1, HW).astype(jnp.int32)

    itemsize = jnp.dtype(img.dtype).itemsize
    # Per-block budget for the img/out slabs. With double-buffered input +
    # output that is ~4x this in VMEM, comfortably under v7x's 64 MiB physical
    # VMEM and within the 48 MiB scoped limit requested below.
    per_block_budget = 8 * 1024 * 1024

    # Channel tile: largest aligned divisor of C that fits the budget.
    tc = _pick_channel_tile(C, per_block_budget // max(1, HW * itemsize))
    # Batch folding: if all channels fit in one block, fold several samples per
    # grid step so tiny problems don't pay ~600 cycles of per-step overhead.
    if tc == C:
        nb = _largest_divisor_leq(N, per_block_budget // max(1, C * HW * itemsize))
    else:
        nb = 1

    grid = (N // nb, C // tc)
    kernel = functools.partial(_com_class_mean_kernel, classes=classes)

    out = pl.pallas_call(
        kernel,
        out_shape=jax.ShapeDtypeStruct((N, C, HW), img.dtype),
        grid_spec=pltpu.PrefetchScalarGridSpec(
            num_scalar_prefetch=0,
            grid=grid,
            in_specs=[
                pl.BlockSpec((nb, tc, HW), lambda n, c: (n, c, 0)),
                pl.BlockSpec((nb, 1, HW), lambda n, c: (n, 0, 0)),
            ],
            out_specs=pl.BlockSpec((nb, tc, HW), lambda n, c: (n, c, 0)),
        ),
        compiler_params=pltpu.CompilerParams(
            dimension_semantics=("parallel", "parallel"),
            vmem_limit_bytes=48 * 1024 * 1024,
        ),
    )(img_f, gt_f)

    return out.reshape(N, C, H, W)


def _reference(img, gt, classes):
    # Pure-JAX reference mirroring the PyTorch loop exactly.
    out = img
    for i in range(classes):
        mask = (gt == i).astype(jnp.float32)
        s = jnp.sum(out * mask, axis=(2, 3), keepdims=True)
        c = jnp.sum(mask, axis=(2, 3), keepdims=True)
        out = (1.0 - mask) * out + (s / (c + 1e-8)) * mask
    return out


if __name__ == "__main__":
    classes = 4
    N, C, H, W = 2, 4, 16, 16

    key = jax.random.PRNGKey(0)
    k_img, k_gt = jax.random.split(key)
    img = jax.random.normal(k_img, (N, C, H, W), dtype=jnp.float32)
    gt = jax.random.randint(k_gt, (N, 1, H, W), minval=0, maxval=classes,
                            dtype=jnp.int32)

    out = com_class_mean(img, gt, classes)
    out = jax.block_until_ready(out)

    ref = _reference(img, gt, classes)
    assert out.shape == (N, C, H, W)
    assert jnp.allclose(out, ref, atol=1e-5, rtol=1e-5), \
        float(jnp.max(jnp.abs(out - ref)))

    print("KERNEL_OK")
</pallas_src>

<mosaic_0001>
module attributes {stable_mosaic.version = 11 : i64} {
  func.func @_com_class_mean_kernel(%arg0: i32, %arg1: i32, %arg2: memref<2x4x256xf32, #tpu.memory_space<vmem>>, %arg3: memref<2x1x256xi32, #tpu.memory_space<vmem>>, %arg4: memref<2x4x256xf32, #tpu.memory_space<vmem>>) attributes {dimension_semantics = [#tpu.dimension_semantics<parallel>, #tpu.dimension_semantics<parallel>], iteration_bounds = array<i64: 1, 1>, scalar_prefetch = 0 : i64, scratch_operands = 0 : i64, tpu.core_type = #tpu.core_type<tc>, window_params = [{transform_indices = @transform_0, window_bounds = array<i64: 2, 4, 256>}, {transform_indices = @transform_1, window_bounds = array<i64: 2, 1, 256>}, {transform_indices = @transform_2, window_bounds = array<i64: 2, 4, 256>}]} {
    %c0 = arith.constant 0 : index
    %c0_0 = arith.constant 0 : index
    %c0_1 = arith.constant 0 : index
    %0 = vector.load %arg2[%c0, %c0_0, %c0_1] : memref<2x4x256xf32, #tpu.memory_space<vmem>>, vector<2x4x256xf32>
    %c0_2 = arith.constant 0 : index
    %c0_3 = arith.constant 0 : index
    %c0_4 = arith.constant 0 : index
    %1 = vector.load %arg3[%c0_2, %c0_3, %c0_4] : memref<2x1x256xi32, #tpu.memory_space<vmem>>, vector<2x1x256xi32>
    %2 = tpu.iota {dimensions = array<i32: 1>} : vector<1x4x256xi32>
    %3 = vector.broadcast %2 : vector<1x4x256xi32> to vector<2x4x256xi32>
    %4 = vector.broadcast %1 : vector<2x1x256xi32> to vector<2x4x256xi32>
    %5 = arith.cmpi eq, %3, %4 : vector<2x4x256xi32>
    %6 = arith.extui %5 : vector<2x4x256xi1> to vector<2x4x256xi32>
    %7 = arith.sitofp %6 : vector<2x4x256xi32> to vector<2x4x256xf32>
    %cst = arith.constant 1.000000e+00 : f32
    %8 = vector.broadcast %cst : f32 to vector<2x1x256xf32>
    "tpu.trace_start"() <{level = 10 : i32, message = "nox,nkx->nok"}> : () -> ()
    %cst_5 = arith.constant dense<0.000000e+00> : vector<2x1x4xf32>
    %9 = tpu.matmul %8, %7, %cst_5 {dimension_numbers = #tpu.dot_dimension_numbers<[2], [2], [1], [1], [0, 0, 0, 1, 1, 1], [0], [0]>, precision = #tpu.contract_precision<fp32>} : vector<2x1x256xf32>, vector<2x4x256xf32>, vector<2x1x4xf32> -> vector<2x1x4xf32>
    "tpu.trace_stop"() : () -> ()
    "tpu.trace_start"() <{level = 10 : i32, message = "ncx,nkx->nck"}> : () -> ()
    %cst_6 = arith.constant dense<0.000000e+00> : vector<2x4x4xf32>
    %10 = tpu.matmul %0, %7, %cst_6 {dimension_numbers = #tpu.dot_dimension_numbers<[2], [2], [1], [1], [0, 0, 0, 1, 1, 1], [0], [0]>, precision = #tpu.contract_precision<fp32>} : vector<2x4x256xf32>, vector<2x4x256xf32>, vector<2x4x4xf32> -> vector<2x4x4xf32>
    "tpu.trace_stop"() : () -> ()
    %cst_7 = arith.constant 9.99999993E-9 : f32
    %11 = vector.broadcast %cst_7 : f32 to vector<2x1x4xf32>
    %12 = arith.addf %9, %11 : vector<2x1x4xf32>
    %cst_8 = arith.constant 1.000000e+00 : f32
    %13 = vector.broadcast %cst_8 : f32 to vector<2x1x4xf32>
    %14 = arith.divf %13, %12 : vector<2x1x4xf32>
    %15 = vector.broadcast %14 : vector<2x1x4xf32> to vector<2x4x4xf32>
    %16 = arith.mulf %10, %15 : vector<2x4x4xf32>
    "tpu.trace_start"() <{level = 10 : i32, message = "nck,nkx->ncx"}> : () -> ()
    %cst_9 = arith.constant dense<0.000000e+00> : vector<2x4x256xf32>
    %17 = tpu.matmul %16, %7, %cst_9 {dimension_numbers = #tpu.dot_dimension_numbers<[2], [1], [1], [2], [0, 0, 0, 1, 1, 2], [0], [0]>, precision = #tpu.contract_precision<fp32>} : vector<2x4x4xf32>, vector<2x4x256xf32>, vector<2x4x256xf32> -> vector<2x4x256xf32>
    %c0_i32 = arith.constant 0 : i32
    "tpu.trace_stop"() : () -> ()
    %18 = vector.broadcast %c0_i32 : i32 to vector<2x1x256xi32>
    %19 = arith.cmpi sge, %1, %18 : vector<2x1x256xi32>
    %c4_i32 = arith.constant 4 : i32
    %20 = vector.broadcast %c4_i32 : i32 to vector<2x1x256xi32>
    %21 = arith.cmpi slt, %1, %20 : vector<2x1x256xi32>
    %22 = arith.andi %19, %21 : vector<2x1x256xi1>
    %23 = vector.shape_cast %22 : vector<2x1x256xi1> to vector<2x1x256xi1>
    %24 = vector.broadcast %23 : vector<2x1x256xi1> to vector<2x4x256xi1>
    %25 = arith.select %24, %17, %0 : vector<2x4x256xi1>, vector<2x4x256xf32>
    %c0_10 = arith.constant 0 : index
    %c0_11 = arith.constant 0 : index
    %c0_12 = arith.constant 0 : index
    %26 = vector.load %arg4[%c0_10, %c0_11, %c0_12] : memref<2x4x256xf32, #tpu.memory_space<vmem>>, vector<2x4x256xf32>
    tpu.vector_store %arg4[%c0_10, %c0_11, %c0_12], %25 {strides = array<i32>} : memref<2x4x256xf32, #tpu.memory_space<vmem>>, vector<2x4x256xf32>,
    return
  }
  func.func @transform_0(%arg0: i32, %arg1: i32) -> (i32, i32, i32) {
    %c0_i32 = arith.constant 0 : i32
    %c0_i32_0 = arith.constant 0 : i32
    return %arg0, %arg1, %c0_i32 : i32, i32, i32
  }
  func.func @transform_1(%arg0: i32, %arg1: i32) -> (i32, i32, i32) {
    %c0_i32 = arith.constant 0 : i32
    %c0_i32_0 = arith.constant 0 : i32
    %c0_i32_1 = arith.constant 0 : i32
    return %arg0, %c0_i32, %c0_i32_0 : i32, i32, i32
  }
  func.func @transform_2(%arg0: i32, %arg1: i32) -> (i32, i32, i32) {
    %c0_i32 = arith.constant 0 : i32
    %c0_i32_0 = arith.constant 0 : i32
    return %arg0, %arg1, %c0_i32 : i32, i32, i32
  }
}

</mosaic_0001>

<llo_original>
// kernel: tpu_custom_call.1
$region0: #{tpu_custom_call.1}
  #allocation0 [shape = 'u32[]', space=smem, size = 0x4, offset = 0x4, fixed_abs, tag = 'smem constant byte address 0x4 - core index']
  #allocation1 [shape = 'u32[144,128]{1,0:T(1,128)}', space=vmem, size = 0x12000, scoped, tag = 'internal scratch']
  %s0 = inlined_call_operand.hbm [shape: f32[2,4,256], index: 0, kind: input, shape index: {}]
  %s1 = inlined_call_operand.hbm [shape: s32[2,1,256], index: 1, kind: input, shape index: {}]
  %s2 = inlined_call_operand.hbm [shape: f32[2,4,256], index: 2, kind: output, shape index: {}]
  %s3 = sld [smem:[#allocation0]]
  $region26: #{tpu_custom_call.1} parent=0
    _
  %s5 = ssub.s32 1, %s3
  %s6 = scalar_select 0, %s5, %s3
  $region1: #{tpu_custom_call.1} parent=0
    #allocation2 [shape = 'u8[8192]{0}', space=vmem, size = 0x2000, scoped, tag = 'input window, operand 0, single buffered']
    #allocation3 [shape = 's32[1]{0}', space=sflag, size = 0x4, scoped, tag = 'scoped memory for tpu_custom_call.1']
    #allocation4 [shape = 's32[1]{0}', space=sflag, size = 0x4, scoped, tag = 'scoped memory for tpu_custom_call.1']
    #allocation5 [shape = 'u8[2048]{0}', space=vmem, size = 0x800, scoped, tag = 'input window, operand 1, single buffered']
    #allocation6 [shape = 's32[1]{0}', space=sflag, size = 0x4, scoped, tag = 'scoped memory for tpu_custom_call.1']
    #allocation7 [shape = 'u8[8192]{0}', space=vmem, size = 0x2000, scoped, tag = 'output window, operand 0, single buffered']
    %7 = vsyncpa [#allocation3], 0
    %8 = vsyncpa [#allocation6], 0
    %9 = vsyncpa [#allocation4], 0
    // Predicated region
    $region2: #{tpu_custom_call.1} parent=1 // pred_check
      _
    $region3: #{tpu_custom_call.1} parent=1 // pred_check_branch
      %11 = sbr.rel (0) target = $region5
    $region4: #{tpu_custom_call.1} parent=1 // pred_region
      %s13 = ssub.s32 256, 256
      %14 = vsyncadd [#allocation3], %s13
      %s15 = sshll.u32 [#allocation2], 4
      %s16 = int_to_ptr.vmem [resolvable:$true] %s15
      %21 = dma.hbm_to_vmem [thread:$0]  %s0, 256, %s16, [#allocation3], 128, 128, 8
    $region5: #{tpu_custom_call.1} parent=1 // pred_fallthru
      _
    // Predicated region
    $region6: #{tpu_custom_call.1} parent=1 // pred_check
      _
    $region7: #{tpu_custom_call.1} parent=1 // pred_check_branch
      %23 = sbr.rel (0) target = $region9
    $region8: #{tpu_custom_call.1} parent=1 // pred_region
      %s25 = ssub.s32 64, 64
      %26 = vsyncadd [#allocation6], %s25
      %s27 = sshll.u32 [#allocation5], 4
      %s28 = int_to_ptr.vmem [resolvable:$true] %s27
      %33 = dma.hbm_to_vmem [thread:$0]  %s1, 64, %s28, [#allocation6], 32, 32, 2
    $region9: #{tpu_custom_call.1} parent=1 // pred_fallthru
      _
    // Predicated region
    $region10: #{tpu_custom_call.1} parent=1 // pred_check
      _
    $region11: #{tpu_custom_call.1} parent=1 // pred_check_branch
      %35 = sbr.rel (0) target = $region13
    $region12: #{tpu_custom_call.1} parent=1 // pred_region
      %36 = dma.done [#allocation3], 256
    $region13: #{tpu_custom_call.1} parent=1 // pred_fallthru
      _
    // Predicated region
    $region14: #{tpu_custom_call.1} parent=1 // pred_check
      _
    $region15: #{tpu_custom_call.1} parent=1 // pred_check_branch
      %38 = sbr.rel (0) target = $region17
    $region16: #{tpu_custom_call.1} parent=1 // pred_region
      %39 = dma.done [#allocation6], 64
    $region17: #{tpu_custom_call.1} parent=1 // pred_fallthru
      _
    %v40 = vld [vmem:[#allocation2] sm:$0xff]
    %v41 = vld [vmem:[#allocation2 + $0x8] sm:$0xff]
    %v42 = vld [vmem:[#allocation5] sm:$0x3]
    %v43 = vld [vmem:[#allocation5 + $0x2] sm:$0x3]
    %v44 = vlaneseq
    %v45 = vshrl.u32 %v44, 7
    %v46 = vlaneseq
    %v47 = vshrl.u32 %v46, 7
    %v48 = vsub.s32 0, %v47
    %v49 = vrot.slane %v42, %v48
    %v50 = vlaneseq
    %v51 = vshrl.u32 %v50, 7
    %v52 = vsub.s32 1, %v51
    %v53 = vrot.slane %v42, %v52
    %v54 = vlaneseq
    %v55 = vshrl.u32 %v54, 7
    %v56 = vsub.s32 0, %v55
    %v57 = vrot.slane %v43, %v56
    %v58 = vlaneseq
    %v59 = vshrl.u32 %v58, 7
    %v60 = vsub.s32 1, %v59
    %v61 = vrot.slane %v43, %v60
    %vm62 = vcmp.eq.s32.totalorder %v45, %v49
    %vm63 = vcmp.eq.s32.totalorder %v45, %v53
    %vm64 = vcmp.eq.s32.totalorder %v45, %v57
    %vm65 = vcmp.eq.s32.totalorder %v45, %v61
    %v66 = vsel %vm62, 1, 0
    %v67 = vsel %vm63, 1, 0
    %v68 = vsel %vm64, 1, 0
    %v69 = vsel %vm65, 1, 0
    %v70 = vcvt.s32.f32 %v66
    %v71 = vcvt.s32.f32 %v67
    %v72 = vcvt.s32.f32 %v68
    %v73 = vcvt.s32.f32 %v69
    %v75 = vcombine.high %v40, %v40
    %v77 = vand.u32 %v71, 4294901760
    %78 = vmatprep.subr.mxu0 %v77
    %v79 = vand.u32 %v70, 4294901760
    %80 = vmatpush1.xpose.msra.mxu0 %v79
    %81 = vmatprep.subr.mxu0 0.0
    %82 = vmatpush1.xpose.msra.mxu0 0.0
    %83 = vmatprep.subr.mxu0 0.0
    %84 = vmatpush1.xpose.msra.mxu0 0.0
    %85 = vmatprep.subr.mxu0 0.0
    %86 = vmatpush1.xpose.msra.mxu0 0.0
    %87 = vmatprep.subr.mxu0 0.0
    %88 = vmatpush1.xpose.msra.mxu0 0.0
    %89 = vmatprep.subr.mxu0 0.0
    %90 = vmatpush1.xpose.msra.mxu0 0.0
    %91 = vmatprep.subr.mxu0 0.0
    %92 = vmatpush1.xpose.msra.mxu0 0.0
    %93 = vmatprep.subr.mxu0 0.0
    %94 = vmatpush1.xpose.msra.mxu0 0.0
    %95 = vmatprep.subr.mxu0 0.0
    %96 = vmatpush1.xpose.msra.mxu0 0.0
    %97 = vmatprep.subr.mxu0 0.0
    %98 = vmatpush1.xpose.msra.mxu0 0.0
    %99 = vmatprep.subr.mxu0 0.0
    %100 = vmatpush1.xpose.msra.mxu0 0.0
    %101 = vmatprep.subr.mxu0 0.0
    %102 = vmatpush1.xpose.msra.mxu0 0.0
    %103 = vmatprep.subr.mxu0 0.0
    %104 = vmatpush1.xpose.msra.mxu0 0.0
    %105 = vmatprep.subr.mxu0 0.0
    %106 = vmatpush1.xpose.msra.mxu0 0.0
    %107 = vmatprep.subr.mxu0 0.0
    %108 = vmatpush1.xpose.msra.mxu0 0.0
    %109 = vmatprep.subr.mxu0 0.0
    %110 = vmatpush1.xpose.msra.mxu0 0.0
    %111 = vmatprep.subr.mxu0 0.0
    %112 = vmatpush1.xpose.msra.mxu0 0.0
    %113 = vmatprep.subr.mxu0 0.0
    %114 = vmatpush1.xpose.msra.mxu0 0.0
    %115 = vmatprep.subr.mxu0 0.0
    %116 = vmatpush1.xpose.msra.mxu0 0.0
    %117 = vmatprep.subr.mxu0 0.0
    %118 = vmatpush1.xpose.msra.mxu0 0.0
    %119 = vmatprep.subr.mxu0 0.0
    %120 = vmatpush1.xpose.msra.mxu0 0.0
    %121 = vmatprep.subr.mxu0 0.0
    %122 = vmatpush1.xpose.msra.mxu0 0.0
    %123 = vmatprep.subr.mxu0 0.0
    %124 = vmatpush1.xpose.msra.mxu0 0.0
    %125 = vmatprep.subr.mxu0 0.0
    %126 = vmatpush1.xpose.msra.mxu0 0.0
    %127 = vmatprep.subr.mxu0 0.0
    %128 = vmatpush1.xpose.msra.mxu0 0.0
    %129 = vmatprep.subr.mxu0 0.0
    %130 = vmatpush1.xpose.msra.mxu0 0.0
    %131 = vmatprep.subr.mxu0 0.0
    %132 = vmatpush1.xpose.msra.mxu0 0.0
    %133 = vmatprep.subr.mxu0 0.0
    %134 = vmatpush1.xpose.msra.mxu0 0.0
    %135 = vmatprep.subr.mxu0 0.0
    %136 = vmatpush1.xpose.msra.mxu0 0.0
    %137 = vmatprep.subr.mxu0 0.0
    %138 = vmatpush1.xpose.msra.mxu0 0.0
    %139 = vmatprep.subr.mxu0 0.0
    %140 = vmatpush1.xpose.msra.mxu0 0.0
    %141 = vmatprep.subr.mxu0 0.0
    %142 = vmatpush1.xpose.msra.mxu0 0.0
    %v143 = vand.u32 %v75, 4294901760
    %v144 = vsub.f32 %v75, %v143
    %v145 = vand.u32 %v144, 4294901760
    %v146 = vsub.f32 %v144, %v145
    %v147 = vand.u32 %v146, 4294901760
    %148 = vmatprep.mubr.f32.mxu0 %v147
    %v149 = vand.u32 %v40, 4294901760
    %v150 = vsub.f32 %v40, %v149
    %v151 = vand.u32 %v150, 4294901760
    %v152 = vsub.f32 %v150, %v151
    %v153 = vand.u32 %v152, 4294901760
    %154 = vmatmul.mubr.f32.gmra.mrb[0].mxu0 %v153
    %v155 = vpop.f32.mrb[0].mxu0
    %v156 = vadd.f32 0.0, %v155
    %v157 = vpop.f32.mrb[0].mxu0
    %158 = vdwg.mxu0
    %v159 = vand.u32 %v71, 4294901760
    %v160 = vsub.f32 %v71, %v159
    %v161 = vand.u32 %v160, 4294901760
    %v162 = vsub.f32 %v160, %v161
    %v163 = vand.u32 %v162, 4294901760
    %164 = vmatprep.subr.mxu0 %v163
    %v165 = vand.u32 %v70, 4294901760
    %v166 = vsub.f32 %v70, %v165
    %v167 = vand.u32 %v166, 4294901760
    %v168 = vsub.f32 %v166, %v167
    %v169 = vand.u32 %v168, 4294901760
    %170 = vmatpush1.xpose.msra.mxu0 %v169
    %171 = vmatprep.subr.mxu0 0.0
    %172 = vmatpush1.xpose.msra.mxu0 0.0
    %173 = vmatprep.subr.mxu0 0.0
    %174 = vmatpush1.xpose.msra.mxu0 0.0
    %175 = vmatprep.subr.mxu0 0.0
    %176 = vmatpush1.xpose.msra.mxu0 0.0
    %177 = vmatprep.subr.mxu0 0.0
    %178 = vmatpush1.xpose.msra.mxu0 0.0
    %179 = vmatprep.subr.mxu0 0.0
    %180 = vmatpush1.xpose.msra.mxu0 0.0
    %181 = vmatprep.subr.mxu0 0.0
    %182 = vmatpush1.xpose.msra.mxu0 0.0
    %183 = vmatprep.subr.mxu0 0.0
    %184 = vmatpush1.xpose.msra.mxu0 0.0
    %185 = vmatprep.subr.mxu0 0.0
    %186 = vmatpush1.xpose.msra.mxu0 0.0
    %187 = vmatprep.subr.mxu0 0.0
    %188 = vmatpush1.xpose.msra.mxu0 0.0
    %189 = vmatprep.subr.mxu0 0.0
    %190 = vmatpush1.xpose.msra.mxu0 0.0
    %191 = vmatprep.subr.mxu0 0.0
    %192 = vmatpush1.xpose.msra.mxu0 0.0
    %193 = vmatprep.subr.mxu0 0.0
    %194 = vmatpush1.xpose.msra.mxu0 0.0
    %195 = vmatprep.subr.mxu0 0.0
    %196 = vmatpush1.xpose.msra.mxu0 0.0
    %197 = vmatprep.subr.mxu0 0.0
    %198 = vmatpush1.xpose.msra.mxu0 0.0
    %199 = vmatprep.subr.mxu0 0.0
    %200 = vmatpush1.xpose.msra.mxu0 0.0
    %201 = vmatprep.subr.mxu0 0.0
    %202 = vmatpush1.xpose.msra.mxu0 0.0
    %203 = vmatprep.subr.mxu0 0.0
    %204 = vmatpush1.xpose.msra.mxu0 0.0
    %205 = vmatprep.subr.mxu0 0.0
    %206 = vmatpush1.xpose.msra.mxu0 0.0
    %207 = vmatprep.subr.mxu0 0.0
    %208 = vmatpush1.xpose.msra.mxu0 0.0
    %209 = vmatprep.subr.mxu0 0.0
    %210 = vmatpush1.xpose.msra.mxu0 0.0
    %211 = vmatprep.subr.mxu0 0.0
    %212 = vmatpush1.xpose.msra.mxu0 0.0
    %213 = vmatprep.subr.mxu0 0.0
    %214 = vmatpush1.xpose.msra.mxu0 0.0
    %215 = vmatprep.subr.mxu0 0.0
    %216 = vmatpush1.xpose.msra.mxu0 0.0
    %217 = vmatprep.subr.mxu0 0.0
    %218 = vmatpush1.xpose.msra.mxu0 0.0
    %219 = vmatprep.subr.mxu0 0.0
    %220 = vmatpush1.xpose.msra.mxu0 0.0
    %221 = vmatprep.subr.mxu0 0.0
    %222 = vmatpush1.xpose.msra.mxu0 0.0
    %223 = vmatprep.subr.mxu0 0.0
    %224 = vmatpush1.xpose.msra.mxu0 0.0
    %225 = vmatprep.subr.mxu0 0.0
    %226 = vmatpush1.xpose.msra.mxu0 0.0
    %227 = vmatprep.subr.mxu0 0.0
    %228 = vmatpush1.xpose.msra.mxu0 0.0
    %229 = vmatprep.subr.mxu0 0.0
    %230 = vmatpush1.xpose.msra.mxu0 0.0
    %231 = vmatprep.subr.mxu0 0.0
    %232 = vmatpush1.xpose.msra.mxu0 0.0
    %v233 = vand.u32 %v75, 4294901760
    %234 = vmatprep.mubr.f32.mxu0 %v233
    %v235 = vand.u32 %v40, 4294901760
    %236 = vmatmul.mubr.f32.gmra.mrb[0].mxu0 %v235
    %v237 = vpop.f32.mrb[0].mxu0
    %v238 = vadd.f32 %v156, %v237
    %v239 = vpop.f32.mrb[0].mxu0
    %240 = vdwg.mxu0
    %v241 = vand.u32 %v71, 4294901760
    %v242 = vsub.f32 %v71, %v241
    %243 = vmatprep.subr.mxu0 %v242
    %v244 = vand.u32 %v70, 4294901760
    %v245 = vsub.f32 %v70, %v244
    %246 = vmatpush1.xpose.msra.mxu0 %v245
    %247 = vmatprep.subr.mxu0 0.0
    %248 = vmatpush1.xpose.msra.mxu0 0.0
    %249 = vmatprep.subr.mxu0 0.0
    %250 = vmatpush1.xpose.msra.mxu0 0.0
    %251 = vmatprep.subr.mxu0 0.0
    %252 = vmatpush1.xpose.msra.mxu0 0.0
    %253 = vmatprep.subr.mxu0 0.0
    %254 = vmatpush1.xpose.msra.mxu0 0.0
    %255 = vmatprep.subr.mxu0 0.0
    %256 = vmatpush1.xpose.msra.mxu0 0.0
    %257 = vmatprep.subr.mxu0 0.0
    %258 = vmatpush1.xpose.msra.mxu0 0.0
    %259 = vmatprep.subr.mxu0 0.0
    %260 = vmatpush1.xpose.msra.mxu0 0.0
    %261 = vmatprep.subr.mxu0 0.0
    %262 = vmatpush1.xpose.msra.mxu0 0.0
    %263 = vmatprep.subr.mxu0 0.0
    %264 = vmatpush1.xpose.msra.mxu0 0.0
    %265 = vmatprep.subr.mxu0 0.0
    %266 = vmatpush1.xpose.msra.mxu0 0.0
    %267 = vmatprep.subr.mxu0 0.0
    %268 = vmatpush1.xpose.msra.mxu0 0.0
    %269 = vmatprep.subr.mxu0 0.0
    %270 = vmatpush1.xpose.msra.mxu0 0.0
    %271 = vmatprep.subr.mxu0 0.0
    %272 = vmatpush1.xpose.msra.mxu0 0.0
    %273 = vmatprep.subr.mxu0 0.0
    %274 = vmatpush1.xpose.msra.mxu0 0.0
    %275 = vmatprep.subr.mxu0 0.0
    %276 = vmatpush1.xpose.msra.mxu0 0.0
    %277 = vmatprep.subr.mxu0 0.0
    %278 = vmatpush1.xpose.msra.mxu0 0.0
    %279 = vmatprep.subr.mxu0 0.0
    %280 = vmatpush1.xpose.msra.mxu0 0.0
    %281 = vmatprep.subr.mxu0 0.0
    %282 = vmatpush1.xpose.msra.mxu0 0.0
    %283 = vmatprep.subr.mxu0 0.0
    %284 = vmatpush1.xpose.msra.mxu0 0.0
    %285 = vmatprep.subr.mxu0 0.0
    %286 = vmatpush1.xpose.msra.mxu0 0.0
    %287 = vmatprep.subr.mxu0 0.0
    %288 = vmatpush1.xpose.msra.mxu0 0.0
    %289 = vmatprep.subr.mxu0 0.0
    %290 = vmatpush1.xpose.msra.mxu0 0.0
    %291 = vmatprep.subr.mxu0 0.0
    %292 = vmatpush1.xpose.msra.mxu0 0.0
    %293 = vmatprep.subr.mxu0 0.0
    %294 = vmatpush1.xpose.msra.mxu0 0.0
    %295 = vmatprep.subr.mxu0 0.0
    %296 = vmatpush1.xpose.msra.mxu0 0.0
    %297 = vmatprep.subr.mxu0 0.0
    %298 = vmatpush1.xpose.msra.mxu0 0.0
    %299 = vmatprep.subr.mxu0 0.0
    %300 = vmatpush1.xpose.msra.mxu0 0.0
    %301 = vmatprep.subr.mxu0 0.0
    %302 = vmatpush1.xpose.msra.mxu0 0.0
    %303 = vmatprep.subr.mxu0 0.0
    %304 = vmatpush1.xpose.msra.mxu0 0.0
    %305 = vmatprep.subr.mxu0 0.0
    %306 = vmatpush1.xpose.msra.mxu0 0.0
    %307 = vmatprep.subr.mxu0 0.0
    %308 = vmatpush1.xpose.msra.mxu0 0.0
    %v309 = vand.u32 %v75, 4294901760
    %v310 = vsub.f32 %v75, %v309
    %311 = vmatprep.mubr.f32.mxu0 %v310
    %v312 = vand.u32 %v40, 4294901760
    %v313 = vsub.f32 %v40, %v312
    %314 = vmatmul.mubr.f32.gmra.mrb[0].mxu0 %v313
    %v315 = vpop.f32.mrb[0].mxu0
    %v316 = vadd.f32 %v238, %v315
    %v317 = vpop.f32.mrb[0].mxu0
    %318 = vdwg.mxu0
    %v319 = vand.u32 %v71, 4294901760
    %320 = vmatprep.subr.mxu0 %v319
    %v321 = vand.u32 %v70, 4294901760
    %322 = vmatpush1.xpose.msra.mxu0 %v321
    %323 = vmatprep.subr.mxu0 0.0
    %324 = vmatpush1.xpose.msra.mxu0 0.0
    %325 = vmatprep.subr.mxu0 0.0
    %326 = vmatpush1.xpose.msra.mxu0 0.0
    %327 = vmatprep.subr.mxu0 0.0
    %328 = vmatpush1.xpose.msra.mxu0 0.0
    %329 = vmatprep.subr.mxu0 0.0
    %330 = vmatpush1.xpose.msra.mxu0 0.0
    %331 = vmatprep.subr.mxu0 0.0
    %332 = vmatpush1.xpose.msra.mxu0 0.0
    %333 = vmatprep.subr.mxu0 0.0
    %334 = vmatpush1.xpose.msra.mxu0 0.0
    %335 = vmatprep.subr.mxu0 0.0
    %336 = vmatpush1.xpose.msra.mxu0 0.0
    %337 = vmatprep.subr.mxu0 0.0
    %338 = vmatpush1.xpose.msra.mxu0 0.0
    %339 = vmatprep.subr.mxu0 0.0
    %340 = vmatpush1.xpose.msra.mxu0 0.0
    %341 = vmatprep.subr.mxu0 0.0
    %342 = vmatpush1.xpose.msra.mxu0 0.0
    %343 = vmatprep.subr.mxu0 0.0
    %344 = vmatpush1.xpose.msra.mxu0 0.0
    %345 = vmatprep.subr.mxu0 0.0
    %346 = vmatpush1.xpose.msra.mxu0 0.0
    %347 = vmatprep.subr.mxu0 0.0
    %348 = vmatpush1.xpose.msra.mxu0 0.0
    %349 = vmatprep.subr.mxu0 0.0
    %350 = vmatpush1.xpose.msra.mxu0 0.0
    %351 = vmatprep.subr.mxu0 0.0
    %352 = vmatpush1.xpose.msra.mxu0 0.0
    %353 = vmatprep.subr.mxu0 0.0
    %354 = vmatpush1.xpose.msra.mxu0 0.0
    %355 = vmatprep.subr.mxu0 0.0
    %356 = vmatpush1.xpose.msra.mxu0 0.0
    %357 = vmatprep.subr.mxu0 0.0
    %358 = vmatpush1.xpose.msra.mxu0 0.0
    %359 = vmatprep.subr.mxu0 0.0
    %360 = vmatpush1.xpose.msra.mxu0 0.0
    %361 = vmatprep.subr.mxu0 0.0
    %362 = vmatpush1.xpose.msra.mxu0 0.0
    %363 = vmatprep.subr.mxu0 0.0
    %364 = vmatpush1.xpose.msra.mxu0 0.0
    %365 = vmatprep.subr.mxu0 0.0
    %366 = vmatpush1.xpose.msra.mxu0 0.0
    %367 = vmatprep.subr.mxu0 0.0
    %368 = vmatpush1.xpose.msra.mxu0 0.0
    %369 = vmatprep.subr.mxu0 0.0
    %370 = vmatpush1.xpose.msra.mxu0 0.0
    %371 = vmatprep.subr.mxu0 0.0
    %372 = vmatpush1.xpose.msra.mxu0 0.0
    %373 = vmatprep.subr.mxu0 0.0
    %374 = vmatpush1.xpose.msra.mxu0 0.0
    %375 = vmatprep.subr.mxu0 0.0
    %376 = vmatpush1.xpose.msra.mxu0 0.0
    %377 = vmatprep.subr.mxu0 0.0
    %378 = vmatpush1.xpose.msra.mxu0 0.0
    %379 = vmatprep.subr.mxu0 0.0
    %380 = vmatpush1.xpose.msra.mxu0 0.0
    %381 = vmatprep.subr.mxu0 0.0
    %382 = vmatpush1.xpose.msra.mxu0 0.0
    %383 = vmatprep.subr.mxu0 0.0
    %384 = vmatpush1.xpose.msra.mxu0 0.0
    %v385 = vand.u32 %v75, 4294901760
    %v386 = vsub.f32 %v75, %v385
    %v387 = vand.u32 %v386, 4294901760
    %388 = vmatprep.mubr.f32.mxu0 %v387
    %v389 = vand.u32 %v40, 4294901760
    %v390 = vsub.f32 %v40, %v389
    %v391 = vand.u32 %v390, 4294901760
    %392 = vmatmul.mubr.f32.gmra.mrb[0].mxu0 %v391
    %v393 = vpop.f32.mrb[0].mxu0
    %v394 = vadd.f32 %v316, %v393
    %v395 = vpop.f32.mrb[0].mxu0
    %396 = vdwg.mxu0
    %v397 = vand.u32 %v71, 4294901760
    %v398 = vsub.f32 %v71, %v397
    %v399 = vand.u32 %v398, 4294901760
    %400 = vmatprep.subr.mxu0 %v399
    %v401 = vand.u32 %v70, 4294901760
    %v402 = vsub.f32 %v70, %v401
    %v403 = vand.u32 %v402, 4294901760
    %404 = vmatpush1.xpose.msra.mxu0 %v403
    %405 = vmatprep.subr.mxu0 0.0
    %406 = vmatpush1.xpose.msra.mxu0 0.0
    %407 = vmatprep.subr.mxu0 0.0
    %408 = vmatpush1.xpose.msra.mxu0 0.0
    %409 = vmatprep.subr.mxu0 0.0
    %410 = vmatpush1.xpose.msra.mxu0 0.0
    %411 = vmatprep.subr.mxu0 0.0
    %412 = vmatpush1.xpose.msra.mxu0 0.0
    %413 = vmatprep.subr.mxu0 0.0
    %414 = vmatpush1.xpose.msra.mxu0 0.0
    %415 = vmatprep.subr.mxu0 0.0
    %416 = vmatpush1.xpose.msra.mxu0 0.0
    %417 = vmatprep.subr.mxu0 0.0
    %418 = vmatpush1.xpose.msra.mxu0 0.0
    %419 = vmatprep.subr.mxu0 0.0
    %420 = vmatpush1.xpose.msra.mxu0 0.0
    %421 = vmatprep.subr.mxu0 0.0
    %422 = vmatpush1.xpose.msra.mxu0 0.0
    %423 = vmatprep.subr.mxu0 0.0
    %424 = vmatpush1.xpose.msra.mxu0 0.0
    %425 = vmatprep.subr.mxu0 0.0
    %426 = vmatpush1.xpose.msra.mxu0 0.0
    %427 = vmatprep.subr.mxu0 0.0
    %428 = vmatpush1.xpose.msra.mxu0 0.0
    %429 = vmatprep.subr.mxu0 0.0
    %430 = vmatpush1.xpose.msra.mxu0 0.0
    %431 = vmatprep.subr.mxu0 0.0
    %432 = vmatpush1.xpose.msra.mxu0 0.0
    %433 = vmatprep.subr.mxu0 0.0
    %434 = vmatpush1.xpose.msra.mxu0 0.0
    %435 = vmatprep.subr.mxu0 0.0
    %436 = vmatpush1.xpose.msra.mxu0 0.0
    %437 = vmatprep.subr.mxu0 0.0
    %438 = vmatpush1.xpose.msra.mxu0 0.0
    %439 = vmatprep.subr.mxu0 0.0
    %440 = vmatpush1.xpose.msra.mxu0 0.0
    %441 = vmatprep.subr.mxu0 0.0
    %442 = vmatpush1.xpose.msra.mxu0 0.0
    %443 = vmatprep.subr.mxu0 0.0
    %444 = vmatpush1.xpose.msra.mxu0 0.0
    %445 = vmatprep.subr.mxu0 0.0
    %446 = vmatpush1.xpose.msra.mxu0 0.0
    %447 = vmatprep.subr.mxu0 0.0
    %448 = vmatpush1.xpose.msra.mxu0 0.0
    %449 = vmatprep.subr.mxu0 0.0
    %450 = vmatpush1.xpose.msra.mxu0 0.0
    %451 = vmatprep.subr.mxu0 0.0
    %452 = vmatpush1.xpose.msra.mxu0 0.0
    %453 = vmatprep.subr.mxu0 0.0
    %454 = vmatpush1.xpose.msra.mxu0 0.0
    %455 = vmatprep.subr.mxu0 0.0
    %456 = vmatpush1.xpose.msra.mxu0 0.0
    %457 = vmatprep.subr.mxu0 0.0
    %458 = vmatpush1.xpose.msra.mxu0 0.0
    %459 = vmatprep.subr.mxu0 0.0
    %460 = vmatpush1.xpose.msra.mxu0 0.0
    %461 = vmatprep.subr.mxu0 0.0
    %462 = vmatpush1.xpose.msra.mxu0 0.0
    %463 = vmatprep.subr.mxu0 0.0
    %464 = vmatpush1.xpose.msra.mxu0 0.0
    %465 = vmatprep.subr.mxu0 0.0
    %466 = vmatpush1.xpose.msra.mxu0 0.0
    %v467 = vand.u32 %v75, 4294901760
    %468 = vmatprep.mubr.f32.mxu0 %v467
    %v469 = vand.u32 %v40, 4294901760
    %470 = vmatmul.mubr.f32.gmra.mrb[0].mxu0 %v469
    %v471 = vpop.f32.mrb[0].mxu0
    %v472 = vadd.f32 %v394, %v471
    %v473 = vpop.f32.mrb[0].mxu0
    %474 = vdwg.mxu0
    %v475 = vand.u32 %v71, 4294901760
    %476 = vmatprep.subr.mxu0 %v475
    %v477 = vand.u32 %v70, 4294901760
    %478 = vmatpush1.xpose.msra.mxu0 %v477
    %479 = vmatprep.subr.mxu0 0.0
    %480 = vmatpush1.xpose.msra.mxu0 0.0
    %481 = vmatprep.subr.mxu0 0.0
    %482 = vmatpush1.xpose.msra.mxu0 0.0
    %483 = vmatprep.subr.mxu0 0.0
    %484 = vmatpush1.xpose.msra.mxu0 0.0
    %485 = vmatprep.subr.mxu0 0.0
    %486 = vmatpush1.xpose.msra.mxu0 0.0
    %487 = vmatprep.subr.mxu0 0.0
    %488 = vmatpush1.xpose.msra.mxu0 0.0
    %489 = vmatprep.subr.mxu0 0.0
    %490 = vmatpush1.xpose.msra.mxu0 0.0
    %491 = vmatprep.subr.mxu0 0.0
    %492 = vmatpush1.xpose.msra.mxu0 0.0
    %493 = vmatprep.subr.mxu0 0.0
    %494 = vmatpush1.xpose.msra.mxu0 0.0
    %495 = vmatprep.subr.mxu0 0.0
    %496 = vmatpush1.xpose.msra.mxu0 0.0
    %497 = vmatprep.subr.mxu0 0.0
    %498 = vmatpush1.xpose.msra.mxu0 0.0
    %499 = vmatprep.subr.mxu0 0.0
    %500 = vmatpush1.xpose.msra.mxu0 0.0
    %501 = vmatprep.subr.mxu0 0.0
    %502 = vmatpush1.xpose.msra.mxu0 0.0
    %503 = vmatprep.subr.mxu0 0.0
    %504 = vmatpush1.xpose.msra.mxu0 0.0
    %505 = vmatprep.subr.mxu0 0.0
    %506 = vmatpush1.xpose.msra.mxu0 0.0
    %507 = vmatprep.subr.mxu0 0.0
    %508 = vmatpush1.xpose.msra.mxu0 0.0
    %509 = vmatprep.subr.mxu0 0.0
    %510 = vmatpush1.xpose.msra.mxu0 0.0
    %511 = vmatprep.subr.mxu0 0.0
    %512 = vmatpush1.xpose.msra.mxu0 0.0
    %513 = vmatprep.subr.mxu0 0.0
    %514 = vmatpush1.xpose.msra.mxu0 0.0
    %515 = vmatprep.subr.mxu0 0.0
    %516 = vmatpush1.xpose.msra.mxu0 0.0
    %517 = vmatprep.subr.mxu0 0.0
    %518 = vmatpush1.xpose.msra.mxu0 0.0
    %519 = vmatprep.subr.mxu0 0.0
    %520 = vmatpush1.xpose.msra.mxu0 0.0
    %521 = vmatprep.subr.mxu0 0.0
    %522 = vmatpush1.xpose.msra.mxu0 0.0
    %523 = vmatprep.subr.mxu0 0.0
    %524 = vmatpush1.xpose.msra.mxu0 0.0
    %525 = vmatprep.subr.mxu0 0.0
    %526 = vmatpush1.xpose.msra.mxu0 0.0
    %527 = vmatprep.subr.mxu0 0.0
    %528 = vmatpush1.xpose.msra.mxu0 0.0
    %529 = vmatprep.subr.mxu0 0.0
    %530 = vmatpush1.xpose.msra.mxu0 0.0
    %531 = vmatprep.subr.mxu0 0.0
    %532 = vmatpush1.xpose.msra.mxu0 0.0
    %533 = vmatprep.subr.mxu0 0.0
    %534 = vmatpush1.xpose.msra.mxu0 0.0
    %535 = vmatprep.subr.mxu0 0.0
    %536 = vmatpush1.xpose.msra.mxu0 0.0
    %537 = vmatprep.subr.mxu0 0.0
    %538 = vmatpush1.xpose.msra.mxu0 0.0
    %539 = vmatprep.subr.mxu0 0.0
    %540 = vmatpush1.xpose.msra.mxu0 0.0
    %v541 = vand.u32 %v75, 4294901760
    %542 = vmatprep.mubr.f32.mxu0 %v541
    %v543 = vand.u32 %v40, 4294901760
    %544 = vmatmul.mubr.f32.gmra.mrb[0].mxu0 %v543
    %v545 = vpop.f32.mrb[0].mxu0
    %v546 = vadd.f32 %v472, %v545
    %v547 = vpop.f32.mrb[0].mxu0
    %548 = vdwg.mxu0
    %v550 = vcombine.high %v41, %v41
    %v552 = vand.u32 %v73, 4294901760
    %553 = vmatprep.subr.mxu0 %v552
    %v554 = vand.u32 %v72, 4294901760
    %555 = vmatpush1.xpose.msra.mxu0 %v554
    %556 = vmatprep.subr.mxu0 0.0
    %557 = vmatpush1.xpose.msra.mxu0 0.0
    %558 = vmatprep.subr.mxu0 0.0
    %559 = vmatpush1.xpose.msra.mxu0 0.0
    %560 = vmatprep.subr.mxu0 0.0
    %561 = vmatpush1.xpose.msra.mxu0 0.0
    %562 = vmatprep.subr.mxu0 0.0
    %563 = vmatpush1.xpose.msra.mxu0 0.0
    %564 = vmatprep.subr.mxu0 0.0
    %565 = vmatpush1.xpose.msra.mxu0 0.0
    %566 = vmatprep.subr.mxu0 0.0
    %567 = vmatpush1.xpose.msra.mxu0 0.0
    %568 = vmatprep.subr.mxu0 0.0
    %569 = vmatpush1.xpose.msra.mxu0 0.0
    %570 = vmatprep.subr.mxu0 0.0
    %571 = vmatpush1.xpose.msra.mxu0 0.0
    %572 = vmatprep.subr.mxu0 0.0
    %573 = vmatpush1.xpose.msra.mxu0 0.0
    %574 = vmatprep.subr.mxu0 0.0
    %575 = vmatpush1.xpose.msra.mxu0 0.0
    %576 = vmatprep.subr.mxu0 0.0
    %577 = vmatpush1.xpose.msra.mxu0 0.0
    %578 = vmatprep.subr.mxu0 0.0
    %579 = vmatpush1.xpose.msra.mxu0 0.0
    %580 = vmatprep.subr.mxu0 0.0
    %581 = vmatpush1.xpose.msra.mxu0 0.0
    %582 = vmatprep.subr.mxu0 0.0
    %583 = vmatpush1.xpose.msra.mxu0 0.0
    %584 = vmatprep.subr.mxu0 0.0
    %585 = vmatpush1.xpose.msra.mxu0 0.0
    %586 = vmatprep.subr.mxu0 0.0
    %587 = vmatpush1.xpose.msra.mxu0 0.0
    %588 = vmatprep.subr.mxu0 0.0
    %589 = vmatpush1.xpose.msra.mxu0 0.0
    %590 = vmatprep.subr.mxu0 0.0
    %591 = vmatpush1.xpose.msra.mxu0 0.0
    %592 = vmatprep.subr.mxu0 0.0
    %593 = vmatpush1.xpose.msra.mxu0 0.0
    %594 = vmatprep.subr.mxu0 0.0
    %595 = vmatpush1.xpose.msra.mxu0 0.0
    %596 = vmatprep.subr.mxu0 0.0
    %597 = vmatpush1.xpose.msra.mxu0 0.0
    %598 = vmatprep.subr.mxu0 0.0
    %599 = vmatpush1.xpose.msra.mxu0 0.0
    %600 = vmatprep.subr.mxu0 0.0
    %601 = vmatpush1.xpose.msra.mxu0 0.0
    %602 = vmatprep.subr.mxu0 0.0
    %603 = vmatpush1.xpose.msra.mxu0 0.0
    %604 = vmatprep.subr.mxu0 0.0
    %605 = vmatpush1.xpose.msra.mxu0 0.0
    %606 = vmatprep.subr.mxu0 0.0
    %607 = vmatpush1.xpose.msra.mxu0 0.0
    %608 = vmatprep.subr.mxu0 0.0
    %609 = vmatpush1.xpose.msra.mxu0 0.0
    %610 = vmatprep.subr.mxu0 0.0
    %611 = vmatpush1.xpose.msra.mxu0 0.0
    %612 = vmatprep.subr.mxu0 0.0
    %613 = vmatpush1.xpose.msra.mxu0 0.0
    %614 = vmatprep.subr.mxu0 0.0
    %615 = vmatpush1.xpose.msra.mxu0 0.0
    %616 = vmatprep.subr.mxu0 0.0
    %617 = vmatpush1.xpose.msra.mxu0 0.0
    %v618 = vand.u32 %v550, 4294901760
    %v619 = vsub.f32 %v550, %v618
    %v620 = vand.u32 %v619, 4294901760
    %v621 = vsub.f32 %v619, %v620
    %v622 = vand.u32 %v621, 4294901760
    %623 = vmatprep.mubr.f32.mxu0 %v622
    %v624 = vand.u32 %v41, 4294901760
    %v625 = vsub.f32 %v41, %v624
    %v626 = vand.u32 %v625, 4294901760
    %v627 = vsub.f32 %v625, %v626
    %v628 = vand.u32 %v627, 4294901760
    %629 = vmatmul.mubr.f32.gmra.mrb[0].mxu0 %v628
    %v630 = vpop.f32.mrb[0].mxu0
    %v631 = vadd.f32 0.0, %v630
    %v632 = vpop.f32.mrb[0].mxu0
    %633 = vdwg.mxu0
    %v634 = vand.u32 %v73, 4294901760
    %v635 = vsub.f32 %v73, %v634
    %v636 = vand.u32 %v635, 4294901760
    %v637 = vsub.f32 %v635, %v636
    %v638 = vand.u32 %v637, 4294901760
    %639 = vmatprep.subr.mxu0 %v638
    %v640 = vand.u32 %v72, 4294901760
    %v641 = vsub.f32 %v72, %v640
    %v642 = vand.u32 %v641, 4294901760
    %v643 = vsub.f32 %v641, %v642
    %v644 = vand.u32 %v643, 4294901760
    %645 = vmatpush1.xpose.msra.mxu0 %v644
    %646 = vmatprep.subr.mxu0 0.0
    %647 = vmatpush1.xpose.msra.mxu0 0.0
    %648 = vmatprep.subr.mxu0 0.0
    %649 = vmatpush1.xpose.msra.mxu0 0.0
    %650 = vmatprep.subr.mxu0 0.0
    %651 = vmatpush1.xpose.msra.mxu0 0.0
    %652 = vmatprep.subr.mxu0 0.0
    %653 = vmatpush1.xpose.msra.mxu0 0.0
    %654 = vmatprep.subr.mxu0 0.0
    %655 = vmatpush1.xpose.msra.mxu0 0.0
    %656 = vmatprep.subr.mxu0 0.0
    %657 = vmatpush1.xpose.msra.mxu0 0.0
    %658 = vmatprep.subr.mxu0 0.0
    %659 = vmatpush1.xpose.msra.mxu0 0.0
    %660 = vmatprep.subr.mxu0 0.0
    %661 = vmatpush1.xpose.msra.mxu0 0.0
    %662 = vmatprep.subr.mxu0 0.0
    %663 = vmatpush1.xpose.msra.mxu0 0.0
    %664 = vmatprep.subr.mxu0 0.0
    %665 = vmatpush1.xpose.msra.mxu0 0.0
    %666 = vmatprep.subr.mxu0 0.0
    %667 = vmatpush1.xpose.msra.mxu0 0.0
    %668 = vmatprep.subr.mxu0 0.0
    %669 = vmatpush1.xpose.msra.mxu0 0.0
    %670 = vmatprep.subr.mxu0 0.0
    %671 = vmatpush1.xpose.msra.mxu0 0.0
    %672 = vmatprep.subr.mxu0 0.0
    %673 = vmatpush1.xpose.msra.mxu0 0.0
    %674 = vmatprep.subr.mxu0 0.0
    %675 = vmatpush1.xpose.msra.mxu0 0.0
    %676 = vmatprep.subr.mxu0 0.0
    %677 = vmatpush1.xpose.msra.mxu0 0.0
    %678 = vmatprep.subr.mxu0 0.0
    %679 = vmatpush1.xpose.msra.mxu0 0.0
    %680 = vmatprep.subr.mxu0 0.0
    %681 = vmatpush1.xpose.msra.mxu0 0.0
    %682 = vmatprep.subr.mxu0 0.0
    %683 = vmatpush1.xpose.msra.mxu0 0.0
    %684 = vmatprep.subr.mxu0 0.0
    %685 = vmatpush1.xpose.msra.mxu0 0.0
    %686 = vmatprep.subr.mxu0 0.0
    %687 = vmatpush1.xpose.msra.mxu0 0.0
    %688 = vmatprep.subr.mxu0 0.0
    %689 = vmatpush1.xpose.msra.mxu0 0.0
    %690 = vmatprep.subr.mxu0 0.0
    %691 = vmatpush1.xpose.msra.mxu0 0.0
    %692 = vmatprep.subr.mxu0 0.0
    %693 = vmatpush1.xpose.msra.mxu0 0.0
    %694 = vmatprep.subr.mxu0 0.0
    %695 = vmatpush1.xpose.msra.mxu0 0.0
    %696 = vmatprep.subr.mxu0 0.0
    %697 = vmatpush1.xpose.msra.mxu0 0.0
    %698 = vmatprep.subr.mxu0 0.0
    %699 = vmatpush1.xpose.msra.mxu0 0.0
    %700 = vmatprep.subr.mxu0 0.0
    %701 = vmatpush1.xpose.msra.mxu0 0.0
    %702 = vmatprep.subr.mxu0 0.0
    %703 = vmatpush1.xpose.msra.mxu0 0.0
    %704 = vmatprep.subr.mxu0 0.0
    %705 = vmatpush1.xpose.msra.mxu0 0.0
    %706 = vmatprep.subr.mxu0 0.0
    %707 = vmatpush1.xpose.msra.mxu0 0.0
    %v708 = vand.u32 %v550, 4294901760
    %709 = vmatprep.mubr.f32.mxu0 %v708
    %v710 = vand.u32 %v41, 4294901760
    %711 = vmatmul.mubr.f32.gmra.mrb[0].mxu0 %v710
    %v712 = vpop.f32.mrb[0].mxu0
    %v713 = vadd.f32 %v631, %v712
    %v714 = vpop.f32.mrb[0].mxu0
    %715 = vdwg.mxu0
    %v716 = vand.u32 %v73, 4294901760
    %v717 = vsub.f32 %v73, %v716
    %718 = vmatprep.subr.mxu0 %v717
    %v719 = vand.u32 %v72, 4294901760
    %v720 = vsub.f32 %v72, %v719
    %721 = vmatpush1.xpose.msra.mxu0 %v720
    %722 = vmatprep.subr.mxu0 0.0
    %723 = vmatpush1.xpose.msra.mxu0 0.0
    %724 = vmatprep.subr.mxu0 0.0
    %725 = vmatpush1.xpose.msra.mxu0 0.0
    %726 = vmatprep.subr.mxu0 0.0
    %727 = vmatpush1.xpose.msra.mxu0 0.0
    %728 = vmatprep.subr.mxu0 0.0
    %729 = vmatpush1.xpose.msra.mxu0 0.0
    %730 = vmatprep.subr.mxu0 0.0
    %731 = vmatpush1.xpose.msra.mxu0 0.0
    %732 = vmatprep.subr.mxu0 0.0
    %733 = vmatpush1.xpose.msra.mxu0 0.0
    %734 = vmatprep.subr.mxu0 0.0
    %735 = vmatpush1.xpose.msra.mxu0 0.0
    %736 = vmatprep.subr.mxu0 0.0
    %737 = vmatpush1.xpose.msra.mxu0 0.0
    %738 = vmatprep.subr.mxu0 0.0
    %739 = vmatpush1.xpose.msra.mxu0 0.0
    %740 = vmatprep.subr.mxu0 0.0
    %741 = vmatpush1.xpose.msra.mxu0 0.0
    %742 = vmatprep.subr.mxu0 0.0
    %743 = vmatpush1.xpose.msra.mxu0 0.0
    %744 = vmatprep.subr.mxu0 0.0
    %745 = vmatpush1.xpose.msra.mxu0 0.0
    %746 = vmatprep.subr.mxu0 0.0
    %747 = vmatpush1.xpose.msra.mxu0 0.0
    %748 = vmatprep.subr.mxu0 0.0
    %749 = vmatpush1.xpose.msra.mxu0 0.0
    %750 = vmatprep.subr.mxu0 0.0
    %751 = vmatpush1.xpose.msra.mxu0 0.0
    %752 = vmatprep.subr.mxu0 0.0
    %753 = vmatpush1.xpose.msra.mxu0 0.0
    %754 = vmatprep.subr.mxu0 0.0
    %755 = vmatpush1.xpose.msra.mxu0 0.0
    %756 = vmatprep.subr.mxu0 0.0
    %757 = vmatpush1.xpose.msra.mxu0 0.0
    %758 = vmatprep.subr.mxu0 0.0
    %759 = vmatpush1.xpose.msra.mxu0 0.0
    %760 = vmatprep.subr.mxu0 0.0
    %761 = vmatpush1.xpose.msra.mxu0 0.0
    %762 = vmatprep.subr.mxu0 0.0
    %763 = vmatpush1.xpose.msra.mxu0 0.0
    %764 = vmatprep.subr.mxu0 0.0
    %765 = vmatpush1.xpose.msra.mxu0 0.0
    %766 = vmatprep.subr.mxu0 0.0
    %767 = vmatpush1.xpose.msra.mxu0 0.0
    %768 = vmatprep.subr.mxu0 0.0
    %769 = vmatpush1.xpose.msra.mxu0 0.0
    %770 = vmatprep.subr.mxu0 0.0
    %771 = vmatpush1.xpose.msra.mxu0 0.0
    %772 = vmatprep.subr.mxu0 0.0
    %773 = vmatpush1.xpose.msra.mxu0 0.0
    %774 = vmatprep.subr.mxu0 0.0
    %775 = vmatpush1.xpose.msra.mxu0 0.0
    %776 = vmatprep.subr.mxu0 0.0
    %777 = vmatpush1.xpose.msra.mxu0 0.0
    %778 = vmatprep.subr.mxu0 0.0
    %779 = vmatpush1.xpose.msra.mxu0 0.0
    %780 = vmatprep.subr.mxu0 0.0
    %781 = vmatpush1.xpose.msra.mxu0 0.0
    %782 = vmatprep.subr.mxu0 0.0
    %783 = vmatpush1.xpose.msra.mxu0 0.0
    %v784 = vand.u32 %v550, 4294901760
    %v785 = vsub.f32 %v550, %v784
    %786 = vmatprep.mubr.f32.mxu0 %v785
    %v787 = vand.u32 %v41, 4294901760
    %v788 = vsub.f32 %v41, %v787
    %789 = vmatmul.mubr.f32.gmra.mrb[0].mxu0 %v788
    %v790 = vpop.f32.mrb[0].mxu0
    %v791 = vadd.f32 %v713, %v790
    %v792 = vpop.f32.mrb[0].mxu0
    %793 = vdwg.mxu0
    %v794 = vand.u32 %v73, 4294901760
    %795 = vmatprep.subr.mxu0 %v794
    %v796 = vand.u32 %v72, 4294901760
    %797 = vmatpush1.xpose.msra.mxu0 %v796
    %798 = vmatprep.subr.mxu0 0.0
    %799 = vmatpush1.xpose.msra.mxu0 0.0
    %800 = vmatprep.subr.mxu0 0.0
    %801 = vmatpush1.xpose.msra.mxu0 0.0
    %802 = vmatprep.subr.mxu0 0.0
    %803 = vmatpush1.xpose.msra.mxu0 0.0
    %804 = vmatprep.subr.mxu0 0.0
    %805 = vmatpush1.xpose.msra.mxu0 0.0
    %806 = vmatprep.subr.mxu0 0.0
    %807 = vmatpush1.xpose.msra.mxu0 0.0
    %808 = vmatprep.subr.mxu0 0.0
    %809 = vmatpush1.xpose.msra.mxu0 0.0
    %810 = vmatprep.subr.mxu0 0.0
    %811 = vmatpush1.xpose.msra.mxu0 0.0
    %812 = vmatprep.subr.mxu0 0.0
    %813 = vmatpush1.xpose.msra.mxu0 0.0
    %814 = vmatprep.subr.mxu0 0.0
    %815 = vmatpush1.xpose.msra.mxu0 0.0
    %816 = vmatprep.subr.mxu0 0.0
    %817 = vmatpush1.xpose.msra.mxu0 0.0
    %818 = vmatprep.subr.mxu0 0.0
    %819 = vmatpush1.xpose.msra.mxu0 0.0
    %820 = vmatprep.subr.mxu0 0.0
    %821 = vmatpush1.xpose.msra.mxu0 0.0
    %822 = vmatprep.subr.mxu0 0.0
    %823 = vmatpush1.xpose.msra.mxu0 0.0
    %824 = vmatprep.subr.mxu0 0.0
    %825 = vmatpush1.xpose.msra.mxu0 0.0
    %826 = vmatprep.subr.mxu0 0.0
    %827 = vmatpush1.xpose.msra.mxu0 0.0
    %828 = vmatprep.subr.mxu0 0.0
    %829 = vmatpush1.xpose.msra.mxu0 0.0
    %830 = vmatprep.subr.mxu0 0.0
    %831 = vmatpush1.xpose.msra.mxu0 0.0
    %832 = vmatprep.subr.mxu0 0.0
    %833 = vmatpush1.xpose.msra.mxu0 0.0
    %834 = vmatprep.subr.mxu0 0.0
    %835 = vmatpush1.xpose.msra.mxu0 0.0
    %836 = vmatprep.subr.mxu0 0.0
    %837 = vmatpush1.xpose.msra.mxu0 0.0
    %838 = vmatprep.subr.mxu0 0.0
    %839 = vmatpush1.xpose.msra.mxu0 0.0
    %840 = vmatprep.subr.mxu0 0.0
    %841 = vmatpush1.xpose.msra.mxu0 0.0
    %842 = vmatprep.subr.mxu0 0.0
    %843 = vmatpush1.xpose.msra.mxu0 0.0
    %844 = vmatprep.subr.mxu0 0.0
    %845 = vmatpush1.xpose.msra.mxu0 0.0
    %846 = vmatprep.subr.mxu0 0.0
    %847 = vmatpush1.xpose.msra.mxu0 0.0
    %848 = vmatprep.subr.mxu0 0.0
    %849 = vmatpush1.xpose.msra.mxu0 0.0
    %850 = vmatprep.subr.mxu0 0.0
    %851 = vmatpush1.xpose.msra.mxu0 0.0
    %852 = vmatprep.subr.mxu0 0.0
    %853 = vmatpush1.xpose.msra.mxu0 0.0
    %854 = vmatprep.subr.mxu0 0.0
    %855 = vmatpush1.xpose.msra.mxu0 0.0
    %856 = vmatprep.subr.mxu0 0.0
    %857 = vmatpush1.xpose.msra.mxu0 0.0
    %858 = vmatprep.subr.mxu0 0.0
    %859 = vmatpush1.xpose.msra.mxu0 0.0
    %v860 = vand.u32 %v550, 4294901760
    %v861 = vsub.f32 %v550, %v860
    %v862 = vand.u32 %v861, 4294901760
    %863 = vmatprep.mubr.f32.mxu0 %v862
    %v864 = vand.u32 %v41, 4294901760
    %v865 = vsub.f32 %v41, %v864
    %v866 = vand.u32 %v865, 4294901760
    %867 = vmatmul.mubr.f32.gmra.mrb[0].mxu0 %v866
    %v868 = vpop.f32.mrb[0].mxu0
    %v869 = vadd.f32 %v791, %v868
    %v870 = vpop.f32.mrb[0].mxu0
    %871 = vdwg.mxu0
    %v872 = vand.u32 %v73, 4294901760
    %v873 = vsub.f32 %v73, %v872
    %v874 = vand.u32 %v873, 4294901760
    %875 = vmatprep.subr.mxu0 %v874
    %v876 = vand.u32 %v72, 4294901760
    %v877 = vsub.f32 %v72, %v876
    %v878 = vand.u32 %v877, 4294901760
    %879 = vmatpush1.xpose.msra.mxu0 %v878
    %880 = vmatprep.subr.mxu0 0.0
    %881 = vmatpush1.xpose.msra.mxu0 0.0
    %882 = vmatprep.subr.mxu0 0.0
    %883 = vmatpush1.xpose.msra.mxu0 0.0
    %884 = vmatprep.subr.mxu0 0.0
    %885 = vmatpush1.xpose.msra.mxu0 0.0
    %886 = vmatprep.subr.mxu0 0.0
    %887 = vmatpush1.xpose.msra.mxu0 0.0
    %888 = vmatprep.subr.mxu0 0.0
    %889 = vmatpush1.xpose.msra.mxu0 0.0
    %890 = vmatprep.subr.mxu0 0.0
    %891 = vmatpush1.xpose.msra.mxu0 0.0
    %892 = vmatprep.subr.mxu0 0.0
    %893 = vmatpush1.xpose.msra.mxu0 0.0
    %894 = vmatprep.subr.mxu0 0.0
    %895 = vmatpush1.xpose.msra.mxu0 0.0
    %896 = vmatprep.subr.mxu0 0.0
    %897 = vmatpush1.xpose.msra.mxu0 0.0
    %898 = vmatprep.subr.mxu0 0.0
    %899 = vmatpush1.xpose.msra.mxu0 0.0
    %900 = vmatprep.subr.mxu0 0.0
    %901 = vmatpush1.xpose.msra.mxu0 0.0
    %902 = vmatprep.subr.mxu0 0.0
    %903 = vmatpush1.xpose.msra.mxu0 0.0
    %904 = vmatprep.subr.mxu0 0.0
    %905 = vmatpush1.xpose.msra.mxu0 0.0
    %906 = vmatprep.subr.mxu0 0.0
    %907 = vmatpush1.xpose.msra.mxu0 0.0
    %908 = vmatprep.subr.mxu0 0.0
    %909 = vmatpush1.xpose.msra.mxu0 0.0
    %910 = vmatprep.subr.mxu0 0.0
    %911 = vmatpush1.xpose.msra.mxu0 0.0
    %912 = vmatprep.subr.mxu0 0.0
    %913 = vmatpush1.xpose.msra.mxu0 0.0
    %914 = vmatprep.subr.mxu0 0.0
    %915 = vmatpush1.xpose.msra.mxu0 0.0
    %916 = vmatprep.subr.mxu0 0.0
    %917 = vmatpush1.xpose.msra.mxu0 0.0
    %918 = vmatprep.subr.mxu0 0.0
    %919 = vmatpush1.xpose.msra.mxu0 0.0
    %920 = vmatprep.subr.mxu0 0.0
    %921 = vmatpush1.xpose.msra.mxu0 0.0
    %922 = vmatprep.subr.mxu0 0.0
    %923 = vmatpush1.xpose.msra.mxu0 0.0
    %924 = vmatprep.subr.mxu0 0.0
    %925 = vmatpush1.xpose.msra.mxu0 0.0
    %926 = vmatprep.subr.mxu0 0.0
    %927 = vmatpush1.xpose.msra.mxu0 0.0
    %928 = vmatprep.subr.mxu0 0.0
    %929 = vmatpush1.xpose.msra.mxu0 0.0
    %930 = vmatprep.subr.mxu0 0.0
    %931 = vmatpush1.xpose.msra.mxu0 0.0
    %932 = vmatprep.subr.mxu0 0.0
    %933 = vmatpush1.xpose.msra.mxu0 0.0
    %934 = vmatprep.subr.mxu0 0.0
    %935 = vmatpush1.xpose.msra.mxu0 0.0
    %936 = vmatprep.subr.mxu0 0.0
    %937 = vmatpush1.xpose.msra.mxu0 0.0
    %938 = vmatprep.subr.mxu0 0.0
    %939 = vmatpush1.xpose.msra.mxu0 0.0
    %940 = vmatprep.subr.mxu0 0.0
    %941 = vmatpush1.xpose.msra.mxu0 0.0
    %v942 = vand.u32 %v550, 4294901760
    %943 = vmatprep.mubr.f32.mxu0 %v942
    %v944 = vand.u32 %v41, 4294901760
    %945 = vmatmul.mubr.f32.gmra.mrb[0].mxu0 %v944
    %v946 = vpop.f32.mrb[0].mxu0
    %v947 = vadd.f32 %v869, %v946
    %v948 = vpop.f32.mrb[0].mxu0
    %949 = vdwg.mxu0
    %v950 = vand.u32 %v73, 4294901760
    %951 = vmatprep.subr.mxu0 %v950
    %v952 = vand.u32 %v72, 4294901760
    %953 = vmatpush1.xpose.msra.mxu0 %v952
    %954 = vmatprep.subr.mxu0 0.0
    %955 = vmatpush1.xpose.msra.mxu0 0.0
    %956 = vmatprep.subr.mxu0 0.0
    %957 = vmatpush1.xpose.msra.mxu0 0.0
    %958 = vmatprep.subr.mxu0 0.0
    %959 = vmatpush1.xpose.msra.mxu0 0.0
    %960 = vmatprep.subr.mxu0 0.0
    %961 = vmatpush1.xpose.msra.mxu0 0.0
    %962 = vmatprep.subr.mxu0 0.0
    %963 = vmatpush1.xpose.msra.mxu0 0.0
    %964 = vmatprep.subr.mxu0 0.0
    %965 = vmatpush1.xpose.msra.mxu0 0.0
    %966 = vmatprep.subr.mxu0 0.0
    %967 = vmatpush1.xpose.msra.mxu0 0.0
    %968 = vmatprep.subr.mxu0 0.0
    %969 = vmatpush1.xpose.msra.mxu0 0.0
    %970 = vmatprep.subr.mxu0 0.0
    %971 = vmatpush1.xpose.msra.mxu0 0.0
    %972 = vmatprep.subr.mxu0 0.0
    %973 = vmatpush1.xpose.msra.mxu0 0.0
    %974 = vmatprep.subr.mxu0 0.0
    %975 = vmatpush1.xpose.msra.mxu0 0.0
    %976 = vmatprep.subr.mxu0 0.0
    %977 = vmatpush1.xpose.msra.mxu0 0.0
    %978 = vmatprep.subr.mxu0 0.0
    %979 = vmatpush1.xpose.msra.mxu0 0.0
    %980 = vmatprep.subr.mxu0 0.0
    %981 = vmatpush1.xpose.msra.mxu0 0.0
    %982 = vmatprep.subr.mxu0 0.0
    %983 = vmatpush1.xpose.msra.mxu0 0.0
    %984 = vmatprep.subr.mxu0 0.0
    %985 = vmatpush1.xpose.msra.mxu0 0.0
    %986 = vmatprep.subr.mxu0 0.0
    %987 = vmatpush1.xpose.msra.mxu0 0.0
    %988 = vmatprep.subr.mxu0 0.0
    %989 = vmatpush1.xpose.msra.mxu0 0.0
    %990 = vmatprep.subr.mxu0 0.0
    %991 = vmatpush1.xpose.msra.mxu0 0.0
    %992 = vmatprep.subr.mxu0 0.0
    %993 = vmatpush1.xpose.msra.mxu0 0.0
    %994 = vmatprep.subr.mxu0 0.0
    %995 = vmatpush1.xpose.msra.mxu0 0.0
    %996 = vmatprep.subr.mxu0 0.0
    %997 = vmatpush1.xpose.msra.mxu0 0.0
    %998 = vmatprep.subr.mxu0 0.0
    %999 = vmatpush1.xpose.msra.mxu0 0.0
    %1000 = vmatprep.subr.mxu0 0.0
    %1001 = vmatpush1.xpose.msra.mxu0 0.0
    %1002 = vmatprep.subr.mxu0 0.0
    %1003 = vmatpush1.xpose.msra.mxu0 0.0
    %1004 = vmatprep.subr.mxu0 0.0
    %1005 = vmatpush1.xpose.msra.mxu0 0.0
    %1006 = vmatprep.subr.mxu0 0.0
    %1007 = vmatpush1.xpose.msra.mxu0 0.0
    %1008 = vmatprep.subr.mxu0 0.0
    %1009 = vmatpush1.xpose.msra.mxu0 0.0
    %1010 = vmatprep.subr.mxu0 0.0
    %1011 = vmatpush1.xpose.msra.mxu0 0.0
    %1012 = vmatprep.subr.mxu0 0.0
    %1013 = vmatpush1.xpose.msra.mxu0 0.0
    %1014 = vmatprep.subr.mxu0 0.0
    %1015 = vmatpush1.xpose.msra.mxu0 0.0
    %v1016 = vand.u32 %v550, 4294901760
    %1017 = vmatprep.mubr.f32.mxu0 %v1016
    %v1018 = vand.u32 %v41, 4294901760
    %1019 = vmatmul.mubr.f32.gmra.mrb[0].mxu0 %v1018
    %v1020 = vpop.f32.mrb[0].mxu0
    %v1021 = vadd.f32 %v947, %v1020
    %v1022 = vpop.f32.mrb[0].mxu0
    %1023 = vdwg.mxu0
    %v1024 = vand.u32 %v71, 4294901760
    %1025 = vmatprep.subr.mxu0 %v1024
    %v1026 = vand.u32 %v70, 4294901760
    %1027 = vmatpush1.xpose.msra.mxu0 %v1026
    %1028 = vmatprep.subr.mxu0 0.0
    %1029 = vmatpush1.xpose.msra.mxu0 0.0
    %1030 = vmatprep.subr.mxu0 0.0
    %1031 = vmatpush1.xpose.msra.mxu0 0.0
    %1032 = vmatprep.subr.mxu0 0.0
    %1033 = vmatpush1.xpose.msra.mxu0 0.0
    %1034 = vmatprep.subr.mxu0 0.0
    %1035 = vmatpush1.xpose.msra.mxu0 0.0
    %1036 = vmatprep.subr.mxu0 0.0
    %1037 = vmatpush1.xpose.msra.mxu0 0.0
    %1038 = vmatprep.subr.mxu0 0.0
    %1039 = vmatpush1.xpose.msra.mxu0 0.0
    %1040 = vmatprep.subr.mxu0 0.0
    %1041 = vmatpush1.xpose.msra.mxu0 0.0
    %1042 = vmatprep.subr.mxu0 0.0
    %1043 = vmatpush1.xpose.msra.mxu0 0.0
    %1044 = vmatprep.subr.mxu0 0.0
    %1045 = vmatpush1.xpose.msra.mxu0 0.0
    %1046 = vmatprep.subr.mxu0 0.0
    %1047 = vmatpush1.xpose.msra.mxu0 0.0
    %1048 = vmatprep.subr.mxu0 0.0
    %1049 = vmatpush1.xpose.msra.mxu0 0.0
    %1050 = vmatprep.subr.mxu0 0.0
    %1051 = vmatpush1.xpose.msra.mxu0 0.0
    %1052 = vmatprep.subr.mxu0 0.0
    %1053 = vmatpush1.xpose.msra.mxu0 0.0
    %1054 = vmatprep.subr.mxu0 0.0
    %1055 = vmatpush1.xpose.msra.mxu0 0.0
    %1056 = vmatprep.subr.mxu0 0.0
    %1057 = vmatpush1.xpose.msra.mxu0 0.0
    %1058 = vmatprep.subr.mxu0 0.0
    %1059 = vmatpush1.xpose.msra.mxu0 0.0
    %1060 = vmatprep.subr.mxu0 0.0
    %1061 = vmatpush1.xpose.msra.mxu0 0.0
    %1062 = vmatprep.subr.mxu0 0.0
    %1063 = vmatpush1.xpose.msra.mxu0 0.0
    %1064 = vmatprep.subr.mxu0 0.0
    %1065 = vmatpush1.xpose.msra.mxu0 0.0
    %1066 = vmatprep.subr.mxu0 0.0
    %1067 = vmatpush1.xpose.msra.mxu0 0.0
    %1068 = vmatprep.subr.mxu0 0.0
    %1069 = vmatpush1.xpose.msra.mxu0 0.0
    %1070 = vmatprep.subr.mxu0 0.0
    %1071 = vmatpush1.xpose.msra.mxu0 0.0
    %1072 = vmatprep.subr.mxu0 0.0
    %1073 = vmatpush1.xpose.msra.mxu0 0.0
    %1074 = vmatprep.subr.mxu0 0.0
    %1075 = vmatpush1.xpose.msra.mxu0 0.0
    %1076 = vmatprep.subr.mxu0 0.0
    %1077 = vmatpush1.xpose.msra.mxu0 0.0
    %1078 = vmatprep.subr.mxu0 0.0
    %1079 = vmatpush1.xpose.msra.mxu0 0.0
    %1080 = vmatprep.subr.mxu0 0.0
    %1081 = vmatpush1.xpose.msra.mxu0 0.0
    %1082 = vmatprep.subr.mxu0 0.0
    %1083 = vmatpush1.xpose.msra.mxu0 0.0
    %1084 = vmatprep.subr.mxu0 0.0
    %1085 = vmatpush1.xpose.msra.mxu0 0.0
    %1086 = vmatprep.subr.mxu0 0.0
    %1087 = vmatpush1.xpose.msra.mxu0 0.0
    %1088 = vmatprep.subr.mxu0 0.0
    %1089 = vmatpush1.xpose.msra.mxu0 0.0
    %1090 = vmatprep.mubr.f32.mxu0 0.0
    %1091 = vmatmul.mubr.f32.gmra.mrb[0].mxu0 0.0
    %v1092 = vpop.f32.mrb[0].mxu0
    %v1093 = vadd.f32 1e-08, %v1092
    %v1094 = vpop.f32.mrb[0].mxu0
    %1095 = vdwg.mxu0
    %v1096 = vand.u32 %v71, 4294901760
    %v1097 = vsub.f32 %v71, %v1096
    %v1098 = vand.u32 %v1097, 4294901760
    %v1099 = vsub.f32 %v1097, %v1098
    %v1100 = vand.u32 %v1099, 4294901760
    %1101 = vmatprep.subr.mxu0 %v1100
    %v1102 = vand.u32 %v70, 4294901760
    %v1103 = vsub.f32 %v70, %v1102
    %v1104 = vand.u32 %v1103, 4294901760
    %v1105 = vsub.f32 %v1103, %v1104
    %v1106 = vand.u32 %v1105, 4294901760
    %1107 = vmatpush1.xpose.msra.mxu0 %v1106
    %1108 = vmatprep.subr.mxu0 0.0
    %1109 = vmatpush1.xpose.msra.mxu0 0.0
    %1110 = vmatprep.subr.mxu0 0.0
    %1111 = vmatpush1.xpose.msra.mxu0 0.0
    %1112 = vmatprep.subr.mxu0 0.0
    %1113 = vmatpush1.xpose.msra.mxu0 0.0
    %1114 = vmatprep.subr.mxu0 0.0
    %1115 = vmatpush1.xpose.msra.mxu0 0.0
    %1116 = vmatprep.subr.mxu0 0.0
    %1117 = vmatpush1.xpose.msra.mxu0 0.0
    %1118 = vmatprep.subr.mxu0 0.0
    %1119 = vmatpush1.xpose.msra.mxu0 0.0
    %1120 = vmatprep.subr.mxu0 0.0
    %1121 = vmatpush1.xpose.msra.mxu0 0.0
    %1122 = vmatprep.subr.mxu0 0.0
    %1123 = vmatpush1.xpose.msra.mxu0 0.0
    %1124 = vmatprep.subr.mxu0 0.0
    %1125 = vmatpush1.xpose.msra.mxu0 0.0
    %1126 = vmatprep.subr.mxu0 0.0
    %1127 = vmatpush1.xpose.msra.mxu0 0.0
    %1128 = vmatprep.subr.mxu0 0.0
    %1129 = vmatpush1.xpose.msra.mxu0 0.0
    %1130 = vmatprep.subr.mxu0 0.0
    %1131 = vmatpush1.xpose.msra.mxu0 0.0
    %1132 = vmatprep.subr.mxu0 0.0
    %1133 = vmatpush1.xpose.msra.mxu0 0.0
    %1134 = vmatprep.subr.mxu0 0.0
    %1135 = vmatpush1.xpose.msra.mxu0 0.0
    %1136 = vmatprep.subr.mxu0 0.0
    %1137 = vmatpush1.xpose.msra.mxu0 0.0
    %1138 = vmatprep.subr.mxu0 0.0
    %1139 = vmatpush1.xpose.msra.mxu0 0.0
    %1140 = vmatprep.subr.mxu0 0.0
    %1141 = vmatpush1.xpose.msra.mxu0 0.0
    %1142 = vmatprep.subr.mxu0 0.0
    %1143 = vmatpush1.xpose.msra.mxu0 0.0
    %1144 = vmatprep.subr.mxu0 0.0
    %1145 = vmatpush1.xpose.msra.mxu0 0.0
    %1146 = vmatprep.subr.mxu0 0.0
    %1147 = vmatpush1.xpose.msra.mxu0 0.0
    %1148 = vmatprep.subr.mxu0 0.0
    %1149 = vmatpush1.xpose.msra.mxu0 0.0
    %1150 = vmatprep.subr.mxu0 0.0
    %1151 = vmatpush1.xpose.msra.mxu0 0.0
    %1152 = vmatprep.subr.mxu0 0.0
    %1153 = vmatpush1.xpose.msra.mxu0 0.0
    %1154 = vmatprep.subr.mxu0 0.0
    %1155 = vmatpush1.xpose.msra.mxu0 0.0
    %1156 = vmatprep.subr.mxu0 0.0
    %1157 = vmatpush1.xpose.msra.mxu0 0.0
    %1158 = vmatprep.subr.mxu0 0.0
    %1159 = vmatpush1.xpose.msra.mxu0 0.0
    %1160 = vmatprep.subr.mxu0 0.0
    %1161 = vmatpush1.xpose.msra.mxu0 0.0
    %1162 = vmatprep.subr.mxu0 0.0
    %1163 = vmatpush1.xpose.msra.mxu0 0.0
    %1164 = vmatprep.subr.mxu0 0.0
    %1165 = vmatpush1.xpose.msra.mxu0 0.0
    %1166 = vmatprep.subr.mxu0 0.0
    %1167 = vmatpush1.xpose.msra.mxu0 0.0
    %1168 = vmatprep.subr.mxu0 0.0
    %1169 = vmatpush1.xpose.msra.mxu0 0.0
    %1170 = vmatprep.mubr.f32.mxu0 1.0
    %1171 = vmatmul.mubr.f32.gmra.mrb[0].mxu0 1.0
    %v1172 = vpop.f32.mrb[0].mxu0
    %v1173 = vadd.f32 %v1093, %v1172
    %v1174 = vpop.f32.mrb[0].mxu0
    %1175 = vdwg.mxu0
    %v1176 = vand.u32 %v71, 4294901760
    %v1177 = vsub.f32 %v71, %v1176
    %1178 = vmatprep.subr.mxu0 %v1177
    %v1179 = vand.u32 %v70, 4294901760
    %v1180 = vsub.f32 %v70, %v1179
    %1181 = vmatpush1.xpose.msra.mxu0 %v1180
    %1182 = vmatprep.subr.mxu0 0.0
    %1183 = vmatpush1.xpose.msra.mxu0 0.0
    %1184 = vmatprep.subr.mxu0 0.0
    %1185 = vmatpush1.xpose.msra.mxu0 0.0
    %1186 = vmatprep.subr.mxu0 0.0
    %1187 = vmatpush1.xpose.msra.mxu0 0.0
    %1188 = vmatprep.subr.mxu0 0.0
    %1189 = vmatpush1.xpose.msra.mxu0 0.0
    %1190 = vmatprep.subr.mxu0 0.0
    %1191 = vmatpush1.xpose.msra.mxu0 0.0
    %1192 = vmatprep.subr.mxu0 0.0
    %1193 = vmatpush1.xpose.msra.mxu0 0.0
    %1194 = vmatprep.subr.mxu0 0.0
    %1195 = vmatpush1.xpose.msra.mxu0 0.0
    %1196 = vmatprep.subr.mxu0 0.0
    %1197 = vmatpush1.xpose.msra.mxu0 0.0
    %1198 = vmatprep.subr.mxu0 0.0
    %1199 = vmatpush1.xpose.msra.mxu0 0.0
    %1200 = vmatprep.subr.mxu0 0.0
    %1201 = vmatpush1.xpose.msra.mxu0 0.0
    %1202 = vmatprep.subr.mxu0 0.0
    %1203 = vmatpush1.xpose.msra.mxu0 0.0
    %1204 = vmatprep.subr.mxu0 0.0
    %1205 = vmatpush1.xpose.msra.mxu0 0.0
    %1206 = vmatprep.subr.mxu0 0.0
    %1207 = vmatpush1.xpose.msra.mxu0 0.0
    %1208 = vmatprep.subr.mxu0 0.0
    %1209 = vmatpush1.xpose.msra.mxu0 0.0
    %1210 = vmatprep.subr.mxu0 0.0
    %1211 = vmatpush1.xpose.msra.mxu0 0.0
    %1212 = vmatprep.subr.mxu0 0.0
    %1213 = vmatpush1.xpose.msra.mxu0 0.0
    %1214 = vmatprep.subr.mxu0 0.0
    %1215 = vmatpush1.xpose.msra.mxu0 0.0
    %1216 = vmatprep.subr.mxu0 0.0
    %1217 = vmatpush1.xpose.msra.mxu0 0.0
    %1218 = vmatprep.subr.mxu0 0.0
    %1219 = vmatpush1.xpose.msra.mxu0 0.0
    %1220 = vmatprep.subr.mxu0 0.0
    %1221 = vmatpush1.xpose.msra.mxu0 0.0
    %1222 = vmatprep.subr.mxu0 0.0
    %1223 = vmatpush1.xpose.msra.mxu0 0.0
    %1224 = vmatprep.subr.mxu0 0.0
    %1225 = vmatpush1.xpose.msra.mxu0 0.0
    %1226 = vmatprep.subr.mxu0 0.0
    %1227 = vmatpush1.xpose.msra.mxu0 0.0
    %1228 = vmatprep.subr.mxu0 0.0
    %1229 = vmatpush1.xpose.msra.mxu0 0.0
    %1230 = vmatprep.subr.mxu0 0.0
    %1231 = vmatpush1.xpose.msra.mxu0 0.0
    %1232 = vmatprep.subr.mxu0 0.0
    %1233 = vmatpush1.xpose.msra.mxu0 0.0
    %1234 = vmatprep.subr.mxu0 0.0
    %1235 = vmatpush1.xpose.msra.mxu0 0.0
    %1236 = vmatprep.subr.mxu0 0.0
    %1237 = vmatpush1.xpose.msra.mxu0 0.0
    %1238 = vmatprep.subr.mxu0 0.0
    %1239 = vmatpush1.xpose.msra.mxu0 0.0
    %1240 = vmatprep.subr.mxu0 0.0
    %1241 = vmatpush1.xpose.msra.mxu0 0.0
    %1242 = vmatprep.subr.mxu0 0.0
    %1243 = vmatpush1.xpose.msra.mxu0 0.0
    %1244 = vmatprep.mubr.f32.mxu0 0.0
    %1245 = vmatmul.mubr.f32.gmra.mrb[0].mxu0 0.0
    %v1246 = vpop.f32.mrb[0].mxu0
    %v1247 = vadd.f32 %v1173, %v1246
    %v1248 = vpop.f32.mrb[0].mxu0
    %1249 = vdwg.mxu0
    %v1250 = vand.u32 %v71, 4294901760
    %1251 = vmatprep.subr.mxu0 %v1250
    %v1252 = vand.u32 %v70, 4294901760
    %1253 = vmatpush1.xpose.msra.mxu0 %v1252
    %1254 = vmatprep.subr.mxu0 0.0
    %1255 = vmatpush1.xpose.msra.mxu0 0.0
    %1256 = vmatprep.subr.mxu0 0.0
    %1257 = vmatpush1.xpose.msra.mxu0 0.0
    %1258 = vmatprep.subr.mxu0 0.0
    %1259 = vmatpush1.xpose.msra.mxu0 0.0
    %1260 = vmatprep.subr.mxu0 0.0
    %1261 = vmatpush1.xpose.msra.mxu0 0.0
    %1262 = vmatprep.subr.mxu0 0.0
    %1263 = vmatpush1.xpose.msra.mxu0 0.0
    %1264 = vmatprep.subr.mxu0 0.0
    %1265 = vmatpush1.xpose.msra.mxu0 0.0
    %1266 = vmatprep.subr.mxu0 0.0
    %1267 = vmatpush1.xpose.msra.mxu0 0.0
    %1268 = vmatprep.subr.mxu0 0.0
    %1269 = vmatpush1.xpose.msra.mxu0 0.0
    %1270 = vmatprep.subr.mxu0 0.0
    %1271 = vmatpush1.xpose.msra.mxu0 0.0
    %1272 = vmatprep.subr.mxu0 0.0
    %1273 = vmatpush1.xpose.msra.mxu0 0.0
    %1274 = vmatprep.subr.mxu0 0.0
    %1275 = vmatpush1.xpose.msra.mxu0 0.0
    %1276 = vmatprep.subr.mxu0 0.0
    %1277 = vmatpush1.xpose.msra.mxu0 0.0
    %1278 = vmatprep.subr.mxu0 0.0
    %1279 = vmatpush1.xpose.msra.mxu0 0.0
    %1280 = vmatprep.subr.mxu0 0.0
    %1281 = vmatpush1.xpose.msra.mxu0 0.0
    %1282 = vmatprep.subr.mxu0 0.0
    %1283 = vmatpush1.xpose.msra.mxu0 0.0
    %1284 = vmatprep.subr.mxu0 0.0
    %1285 = vmatpush1.xpose.msra.mxu0 0.0
    %1286 = vmatprep.subr.mxu0 0.0
    %1287 = vmatpush1.xpose.msra.mxu0 0.0
    %1288 = vmatprep.subr.mxu0 0.0
    %1289 = vmatpush1.xpose.msra.mxu0 0.0
    %1290 = vmatprep.subr.mxu0 0.0
    %1291 = vmatpush1.xpose.msra.mxu0 0.0
    %1292 = vmatprep.subr.mxu0 0.0
    %1293 = vmatpush1.xpose.msra.mxu0 0.0
    %1294 = vmatprep.subr.mxu0 0.0
    %1295 = vmatpush1.xpose.msra.mxu0 0.0
    %1296 = vmatprep.subr.mxu0 0.0
    %1297 = vmatpush1.xpose.msra.mxu0 0.0
    %1298 = vmatprep.subr.mxu0 0.0
    %1299 = vmatpush1.xpose.msra.mxu0 0.0
    %1300 = vmatprep.subr.mxu0 0.0
    %1301 = vmatpush1.xpose.msra.mxu0 0.0
    %1302 = vmatprep.subr.mxu0 0.0
    %1303 = vmatpush1.xpose.msra.mxu0 0.0
    %1304 = vmatprep.subr.mxu0 0.0
    %1305 = vmatpush1.xpose.msra.mxu0 0.0
    %1306 = vmatprep.subr.mxu0 0.0
    %1307 = vmatpush1.xpose.msra.mxu0 0.0
    %1308 = vmatprep.subr.mxu0 0.0
    %1309 = vmatpush1.xpose.msra.mxu0 0.0
    %1310 = vmatprep.subr.mxu0 0.0
    %1311 = vmatpush1.xpose.msra.mxu0 0.0
    %1312 = vmatprep.subr.mxu0 0.0
    %1313 = vmatpush1.xpose.msra.mxu0 0.0
    %1314 = vmatprep.subr.mxu0 0.0
    %1315 = vmatpush1.xpose.msra.mxu0 0.0
    %1316 = vmatprep.mubr.f32.mxu0 0.0
    %1317 = vmatmul.mubr.f32.gmra.mrb[0].mxu0 0.0
    %v1318 = vpop.f32.mrb[0].mxu0
    %v1319 = vadd.f32 %v1247, %v1318
    %v1320 = vpop.f32.mrb[0].mxu0
    %1321 = vdwg.mxu0
    %v1322 = vand.u32 %v71, 4294901760
    %v1323 = vsub.f32 %v71, %v1322
    %v1324 = vand.u32 %v1323, 4294901760
    %1325 = vmatprep.subr.mxu0 %v1324
    %v1326 = vand.u32 %v70, 4294901760
    %v1327 = vsub.f32 %v70, %v1326
    %v1328 = vand.u32 %v1327, 4294901760
    %1329 = vmatpush1.xpose.msra.mxu0 %v1328
    %1330 = vmatprep.subr.mxu0 0.0
    %1331 = vmatpush1.xpose.msra.mxu0 0.0
    %1332 = vmatprep.subr.mxu0 0.0
    %1333 = vmatpush1.xpose.msra.mxu0 0.0
    %1334 = vmatprep.subr.mxu0 0.0
    %1335 = vmatpush1.xpose.msra.mxu0 0.0
    %1336 = vmatprep.subr.mxu0 0.0
    %1337 = vmatpush1.xpose.msra.mxu0 0.0
    %1338 = vmatprep.subr.mxu0 0.0
    %1339 = vmatpush1.xpose.msra.mxu0 0.0
    %1340 = vmatprep.subr.mxu0 0.0
    %1341 = vmatpush1.xpose.msra.mxu0 0.0
    %1342 = vmatprep.subr.mxu0 0.0
    %1343 = vmatpush1.xpose.msra.mxu0 0.0
    %1344 = vmatprep.subr.mxu0 0.0
    %1345 = vmatpush1.xpose.msra.mxu0 0.0
    %1346 = vmatprep.subr.mxu0 0.0
    %1347 = vmatpush1.xpose.msra.mxu0 0.0
    %1348 = vmatprep.subr.mxu0 0.0
    %1349 = vmatpush1.xpose.msra.mxu0 0.0
    %1350 = vmatprep.subr.mxu0 0.0
    %1351 = vmatpush1.xpose.msra.mxu0 0.0
    %1352 = vmatprep.subr.mxu0 0.0
    %1353 = vmatpush1.xpose.msra.mxu0 0.0
    %1354 = vmatprep.subr.mxu0 0.0
    %1355 = vmatpush1.xpose.msra.mxu0 0.0
    %1356 = vmatprep.subr.mxu0 0.0
    %1357 = vmatpush1.xpose.msra.mxu0 0.0
    %1358 = vmatprep.subr.mxu0 0.0
    %1359 = vmatpush1.xpose.msra.mxu0 0.0
    %1360 = vmatprep.subr.mxu0 0.0
    %1361 = vmatpush1.xpose.msra.mxu0 0.0
    %1362 = vmatprep.subr.mxu0 0.0
    %1363 = vmatpush1.xpose.msra.mxu0 0.0
    %1364 = vmatprep.subr.mxu0 0.0
    %1365 = vmatpush1.xpose.msra.mxu0 0.0
    %1366 = vmatprep.subr.mxu0 0.0
    %1367 = vmatpush1.xpose.msra.mxu0 0.0
    %1368 = vmatprep.subr.mxu0 0.0
    %1369 = vmatpush1.xpose.msra.mxu0 0.0
    %1370 = vmatprep.subr.mxu0 0.0
    %1371 = vmatpush1.xpose.msra.mxu0 0.0
    %1372 = vmatprep.subr.mxu0 0.0
    %1373 = vmatpush1.xpose.msra.mxu0 0.0
    %1374 = vmatprep.subr.mxu0 0.0
    %1375 = vmatpush1.xpose.msra.mxu0 0.0
    %1376 = vmatprep.subr.mxu0 0.0
    %1377 = vmatpush1.xpose.msra.mxu0 0.0
    %1378 = vmatprep.subr.mxu0 0.0
    %1379 = vmatpush1.xpose.msra.mxu0 0.0
    %1380 = vmatprep.subr.mxu0 0.0
    %1381 = vmatpush1.xpose.msra.mxu0 0.0
    %1382 = vmatprep.subr.mxu0 0.0
    %1383 = vmatpush1.xpose.msra.mxu0 0.0
    %1384 = vmatprep.subr.mxu0 0.0
    %1385 = vmatpush1.xpose.msra.mxu0 0.0
    %1386 = vmatprep.subr.mxu0 0.0
    %1387 = vmatpush1.xpose.msra.mxu0 0.0
    %1388 = vmatprep.subr.mxu0 0.0
    %1389 = vmatpush1.xpose.msra.mxu0 0.0
    %1390 = vmatprep.subr.mxu0 0.0
    %1391 = vmatpush1.xpose.msra.mxu0 0.0
    %1392 = vmatprep.mubr.f32.mxu0 1.0
    %1393 = vmatmul.mubr.f32.gmra.mrb[0].mxu0 1.0
    %v1394 = vpop.f32.mrb[0].mxu0
    %v1395 = vadd.f32 %v1319, %v1394
    %v1396 = vpop.f32.mrb[0].mxu0
    %1397 = vdwg.mxu0
    %v1398 = vand.u32 %v71, 4294901760
    %1399 = vmatprep.subr.mxu0 %v1398
    %v1400 = vand.u32 %v70, 4294901760
    %1401 = vmatpush1.xpose.msra.mxu0 %v1400
    %1402 = vmatprep.subr.mxu0 0.0
    %1403 = vmatpush1.xpose.msra.mxu0 0.0
    %1404 = vmatprep.subr.mxu0 0.0
    %1405 = vmatpush1.xpose.msra.mxu0 0.0
    %1406 = vmatprep.subr.mxu0 0.0
    %1407 = vmatpush1.xpose.msra.mxu0 0.0
    %1408 = vmatprep.subr.mxu0 0.0
    %1409 = vmatpush1.xpose.msra.mxu0 0.0
    %1410 = vmatprep.subr.mxu0 0.0
    %1411 = vmatpush1.xpose.msra.mxu0 0.0
    %1412 = vmatprep.subr.mxu0 0.0
    %1413 = vmatpush1.xpose.msra.mxu0 0.0
    %1414 = vmatprep.subr.mxu0 0.0
    %1415 = vmatpush1.xpose.msra.mxu0 0.0
    %1416 = vmatprep.subr.mxu0 0.0
    %1417 = vmatpush1.xpose.msra.mxu0 0.0
    %1418 = vmatprep.subr.mxu0 0.0
    %1419 = vmatpush1.xpose.msra.mxu0 0.0
    %1420 = vmatprep.subr.mxu0 0.0
    %1421 = vmatpush1.xpose.msra.mxu0 0.0
    %1422 = vmatprep.subr.mxu0 0.0
    %1423 = vmatpush1.xpose.msra.mxu0 0.0
    %1424 = vmatprep.subr.mxu0 0.0
    %1425 = vmatpush1.xpose.msra.mxu0 0.0
    %1426 = vmatprep.subr.mxu0 0.0
    %1427 = vmatpush1.xpose.msra.mxu0 0.0
    %1428 = vmatprep.subr.mxu0 0.0
    %1429 = vmatpush1.xpose.msra.mxu0 0.0
    %1430 = vmatprep.subr.mxu0 0.0
    %1431 = vmatpush1.xpose.msra.mxu0 0.0
    %1432 = vmatprep.subr.mxu0 0.0
    %1433 = vmatpush1.xpose.msra.mxu0 0.0
    %1434 = vmatprep.subr.mxu0 0.0
    %1435 = vmatpush1.xpose.msra.mxu0 0.0
    %1436 = vmatprep.subr.mxu0 0.0
    %1437 = vmatpush1.xpose.msra.mxu0 0.0
    %1438 = vmatprep.subr.mxu0 0.0
    %1439 = vmatpush1.xpose.msra.mxu0 0.0
    %1440 = vmatprep.subr.mxu0 0.0
    %1441 = vmatpush1.xpose.msra.mxu0 0.0
    %1442 = vmatprep.subr.mxu0 0.0
    %1443 = vmatpush1.xpose.msra.mxu0 0.0
    %1444 = vmatprep.subr.mxu0 0.0
    %1445 = vmatpush1.xpose.msra.mxu0 0.0
    %1446 = vmatprep.subr.mxu0 0.0
    %1447 = vmatpush1.xpose.msra.mxu0 0.0
    %1448 = vmatprep.subr.mxu0 0.0
    %1449 = vmatpush1.xpose.msra.mxu0 0.0
    %1450 = vmatprep.subr.mxu0 0.0
    %1451 = vmatpush1.xpose.msra.mxu0 0.0
    %1452 = vmatprep.subr.mxu0 0.0
    %1453 = vmatpush1.xpose.msra.mxu0 0.0
    %1454 = vmatprep.subr.mxu0 0.0
    %1455 = vmatpush1.xpose.msra.mxu0 0.0
    %1456 = vmatprep.subr.mxu0 0.0
    %1457 = vmatpush1.xpose.msra.mxu0 0.0
    %1458 = vmatprep.subr.mxu0 0.0
    %1459 = vmatpush1.xpose.msra.mxu0 0.0
    %1460 = vmatprep.subr.mxu0 0.0
    %1461 = vmatpush1.xpose.msra.mxu0 0.0
    %1462 = vmatprep.subr.mxu0 0.0
    %1463 = vmatpush1.xpose.msra.mxu0 0.0
    %1464 = vmatprep.mubr.f32.mxu0 1.0
    %1465 = vmatmul.mubr.f32.gmra.mrb[0].mxu0 1.0
    %v1466 = vpop.f32.mrb[0].mxu0
    %v1467 = vadd.f32 %v1395, %v1466
    %v1468 = vpop.f32.mrb[0].mxu0
    %1469 = vdwg.mxu0
    %v1470 = vand.u32 %v73, 4294901760
    %1471 = vmatprep.subr.mxu0 %v1470
    %v1472 = vand.u32 %v72, 4294901760
    %1473 = vmatpush1.xpose.msra.mxu0 %v1472
    %1474 = vmatprep.subr.mxu0 0.0
    %1475 = vmatpush1.xpose.msra.mxu0 0.0
    %1476 = vmatprep.subr.mxu0 0.0
    %1477 = vmatpush1.xpose.msra.mxu0 0.0
    %1478 = vmatprep.subr.mxu0 0.0
    %1479 = vmatpush1.xpose.msra.mxu0 0.0
    %1480 = vmatprep.subr.mxu0 0.0
    %1481 = vmatpush1.xpose.msra.mxu0 0.0
    %1482 = vmatprep.subr.mxu0 0.0
    %1483 = vmatpush1.xpose.msra.mxu0 0.0
    %1484 = vmatprep.subr.mxu0 0.0
    %1485 = vmatpush1.xpose.msra.mxu0 0.0
    %1486 = vmatprep.subr.mxu0 0.0
    %1487 = vmatpush1.xpose.msra.mxu0 0.0
    %1488 = vmatprep.subr.mxu0 0.0
    %1489 = vmatpush1.xpose.msra.mxu0 0.0
    %1490 = vmatprep.subr.mxu0 0.0
    %1491 = vmatpush1.xpose.msra.mxu0 0.0
    %1492 = vmatprep.subr.mxu0 0.0
    %1493 = vmatpush1.xpose.msra.mxu0 0.0
    %1494 = vmatprep.subr.mxu0 0.0
    %1495 = vmatpush1.xpose.msra.mxu0 0.0
    %1496 = vmatprep.subr.mxu0 0.0
    %1497 = vmatpush1.xpose.msra.mxu0 0.0
    %1498 = vmatprep.subr.mxu0 0.0
    %1499 = vmatpush1.xpose.msra.mxu0 0.0
    %1500 = vmatprep.subr.mxu0 0.0
    %1501 = vmatpush1.xpose.msra.mxu0 0.0
    %1502 = vmatprep.subr.mxu0 0.0
    %1503 = vmatpush1.xpose.msra.mxu0 0.0
    %1504 = vmatprep.subr.mxu0 0.0
    %1505 = vmatpush1.xpose.msra.mxu0 0.0
    %1506 = vmatprep.subr.mxu0 0.0
    %1507 = vmatpush1.xpose.msra.mxu0 0.0
    %1508 = vmatprep.subr.mxu0 0.0
    %1509 = vmatpush1.xpose.msra.mxu0 0.0
    %1510 = vmatprep.subr.mxu0 0.0
    %1511 = vmatpush1.xpose.msra.mxu0 0.0
    %1512 = vmatprep.subr.mxu0 0.0
    %1513 = vmatpush1.xpose.msra.mxu0 0.0
    %1514 = vmatprep.subr.mxu0 0.0
    %1515 = vmatpush1.xpose.msra.mxu0 0.0
    %1516 = vmatprep.subr.mxu0 0.0
    %1517 = vmatpush1.xpose.msra.mxu0 0.0
    %1518 = vmatprep.subr.mxu0 0.0
    %1519 = vmatpush1.xpose.msra.mxu0 0.0
    %1520 = vmatprep.subr.mxu0 0.0
    %1521 = vmatpush1.xpose.msra.mxu0 0.0
    %1522 = vmatprep.subr.mxu0 0.0
    %1523 = vmatpush1.xpose.msra.mxu0 0.0
    %1524 = vmatprep.subr.mxu0 0.0
    %1525 = vmatpush1.xpose.msra.mxu0 0.0
    %1526 = vmatprep.subr.mxu0 0.0
    %1527 = vmatpush1.xpose.msra.mxu0 0.0
    %1528 = vmatprep.subr.mxu0 0.0
    %1529 = vmatpush1.xpose.msra.mxu0 0.0
    %1530 = vmatprep.subr.mxu0 0.0
    %1531 = vmatpush1.xpose.msra.mxu0 0.0
    %1532 = vmatprep.subr.mxu0 0.0
    %1533 = vmatpush1.xpose.msra.mxu0 0.0
    %1534 = vmatprep.subr.mxu0 0.0
    %1535 = vmatpush1.xpose.msra.mxu0 0.0
    %1536 = vmatprep.mubr.f32.mxu0 0.0
    %1537 = vmatmul.mubr.f32.gmra.mrb[0].mxu0 0.0
    %v1538 = vpop.f32.mrb[0].mxu0
    %v1539 = vadd.f32 1e-08, %v1538
    %v1540 = vpop.f32.mrb[0].mxu0
    %1541 = vdwg.mxu0
    %v1542 = vand.u32 %v73, 4294901760
    %v1543 = vsub.f32 %v73, %v1542
    %v1544 = vand.u32 %v1543, 4294901760
    %v1545 = vsub.f32 %v1543, %v1544
    %v1546 = vand.u32 %v1545, 4294901760
    %1547 = vmatprep.subr.mxu0 %v1546
    %v1548 = vand.u32 %v72, 4294901760
    %v1549 = vsub.f32 %v72, %v1548
    %v1550 = vand.u32 %v1549, 4294901760
    %v1551 = vsub.f32 %v1549, %v1550
    %v1552 = vand.u32 %v1551, 4294901760
    %1553 = vmatpush1.xpose.msra.mxu0 %v1552
    %1554 = vmatprep.subr.mxu0 0.0
    %1555 = vmatpush1.xpose.msra.mxu0 0.0
    %1556 = vmatprep.subr.mxu0 0.0
    %1557 = vmatpush1.xpose.msra.mxu0 0.0
    %1558 = vmatprep.subr.mxu0 0.0
    %1559 = vmatpush1.xpose.msra.mxu0 0.0
    %1560 = vmatprep.subr.mxu0 0.0
    %1561 = vmatpush1.xpose.msra.mxu0 0.0
    %1562 = vmatprep.subr.mxu0 0.0
    %1563 = vmatpush1.xpose.msra.mxu0 0.0
    %1564 = vmatprep.subr.mxu0 0.0
    %1565 = vmatpush1.xpose.msra.mxu0 0.0
    %1566 = vmatprep.subr.mxu0 0.0
    %1567 = vmatpush1.xpose.msra.mxu0 0.0
    %1568 = vmatprep.subr.mxu0 0.0
    %1569 = vmatpush1.xpose.msra.mxu0 0.0
    %1570 = vmatprep.subr.mxu0 0.0
    %1571 = vmatpush1.xpose.msra.mxu0 0.0
    %1572 = vmatprep.subr.mxu0 0.0
    %1573 = vmatpush1.xpose.msra.mxu0 0.0
    %1574 = vmatprep.subr.mxu0 0.0
    %1575 = vmatpush1.xpose.msra.mxu0 0.0
    %1576 = vmatprep.subr.mxu0 0.0
    %1577 = vmatpush1.xpose.msra.mxu0 0.0
    %1578 = vmatprep.subr.mxu0 0.0
    %1579 = vmatpush1.xpose.msra.mxu0 0.0
    %1580 = vmatprep.subr.mxu0 0.0
    %1581 = vmatpush1.xpose.msra.mxu0 0.0
    %1582 = vmatprep.subr.mxu0 0.0
    %1583 = vmatpush1.xpose.msra.mxu0 0.0
    %1584 = vmatprep.subr.mxu0 0.0
    %1585 = vmatpush1.xpose.msra.mxu0 0.0
    %1586 = vmatprep.subr.mxu0 0.0
    %1587 = vmatpush1.xpose.msra.mxu0 0.0
    %1588 = vmatprep.subr.mxu0 0.0
    %1589 = vmatpush1.xpose.msra.mxu0 0.0
    %1590 = vmatprep.subr.mxu0 0.0
    %1591 = vmatpush1.xpose.msra.mxu0 0.0
    %1592 = vmatprep.subr.mxu0 0.0
    %1593 = vmatpush1.xpose.msra.mxu0 0.0
    %1594 = vmatprep.subr.mxu0 0.0
    %1595 = vmatpush1.xpose.msra.mxu0 0.0
    %1596 = vmatprep.subr.mxu0 0.0
    %1597 = vmatpush1.xpose.msra.mxu0 0.0
    %1598 = vmatprep.subr.mxu0 0.0
    %1599 = vmatpush1.xpose.msra.mxu0 0.0
    %1600 = vmatprep.subr.mxu0 0.0
    %1601 = vmatpush1.xpose.msra.mxu0 0.0
    %1602 = vmatprep.subr.mxu0 0.0
    %1603 = vmatpush1.xpose.msra.mxu0 0.0
    %1604 = vmatprep.subr.mxu0 0.0
    %1605 = vmatpush1.xpose.msra.mxu0 0.0
    %1606 = vmatprep.subr.mxu0 0.0
    %1607 = vmatpush1.xpose.msra.mxu0 0.0
    %1608 = vmatprep.subr.mxu0 0.0
    %1609 = vmatpush1.xpose.msra.mxu0 0.0
    %1610 = vmatprep.subr.mxu0 0.0
    %1611 = vmatpush1.xpose.msra.mxu0 0.0
    %1612 = vmatprep.subr.mxu0 0.0
    %1613 = vmatpush1.xpose.msra.mxu0 0.0
    %1614 = vmatprep.subr.mxu0 0.0
    %1615 = vmatpush1.xpose.msra.mxu0 0.0
    %1616 = vmatprep.mubr.f32.mxu0 1.0
    %1617 = vmatmul.mubr.f32.gmra.mrb[0].mxu0 1.0
    %v1618 = vpop.f32.mrb[0].mxu0
    %v1619 = vadd.f32 %v1539, %v1618
    %v1620 = vpop.f32.mrb[0].mxu0
    %1621 = vdwg.mxu0
    %v1622 = vand.u32 %v73, 4294901760
    %v1623 = vsub.f32 %v73, %v1622
    %1624 = vmatprep.subr.mxu0 %v1623
    %v1625 = vand.u32 %v72, 4294901760
    %v1626 = vsub.f32 %v72, %v1625
    %1627 = vmatpush1.xpose.msra.mxu0 %v1626
    %1628 = vmatprep.subr.mxu0 0.0
    %1629 = vmatpush1.xpose.msra.mxu0 0.0
    %1630 = vmatprep.subr.mxu0 0.0
    %1631 = vmatpush1.xpose.msra.mxu0 0.0
    %1632 = vmatprep.subr.mxu0 0.0
    %1633 = vmatpush1.xpose.msra.mxu0 0.0
    %1634 = vmatprep.subr.mxu0 0.0
    %1635 = vmatpush1.xpose.msra.mxu0 0.0
    %1636 = vmatprep.subr.mxu0 0.0
    %1637 = vmatpush1.xpose.msra.mxu0 0.0
    %1638 = vmatprep.subr.mxu0 0.0
    %1639 = vmatpush1.xpose.msra.mxu0 0.0
    %1640 = vmatprep.subr.mxu0 0.0
    %1641 = vmatpush1.xpose.msra.mxu0 0.0
    %1642 = vmatprep.subr.mxu0 0.0
    %1643 = vmatpush1.xpose.msra.mxu0 0.0
    %1644 = vmatprep.subr.mxu0 0.0
    %1645 = vmatpush1.xpose.msra.mxu0 0.0
    %1646 = vmatprep.subr.mxu0 0.0
    %1647 = vmatpush1.xpose.msra.mxu0 0.0
    %1648 = vmatprep.subr.mxu0 0.0
    %1649 = vmatpush1.xpose.msra.mxu0 0.0
    %1650 = vmatprep.subr.mxu0 0.0
    %1651 = vmatpush1.xpose.msra.mxu0 0.0
    %1652 = vmatprep.subr.mxu0 0.0
    %1653 = vmatpush1.xpose.msra.mxu0 0.0
    %1654 = vmatprep.subr.mxu0 0.0
    %1655 = vmatpush1.xpose.msra.mxu0 0.0
    %1656 = vmatprep.subr.mxu0 0.0
    %1657 = vmatpush1.xpose.msra.mxu0 0.0
    %1658 = vmatprep.subr.mxu0 0.0
    %1659 = vmatpush1.xpose.msra.mxu0 0.0
    %1660 = vmatprep.subr.mxu0 0.0
    %1661 = vmatpush1.xpose.msra.mxu0 0.0
    %1662 = vmatprep.subr.mxu0 0.0
    %1663 = vmatpush1.xpose.msra.mxu0 0.0
    %1664 = vmatprep.subr.mxu0 0.0
    %1665 = vmatpush1.xpose.msra.mxu0 0.0
    %1666 = vmatprep.subr.mxu0 0.0
    %1667 = vmatpush1.xpose.msra.mxu0 0.0
    %1668 = vmatprep.subr.mxu0 0.0
    %1669 = vmatpush1.xpose.msra.mxu0 0.0
    %1670 = vmatprep.subr.mxu0 0.0
    %1671 = vmatpush1.xpose.msra.mxu0 0.0
    %1672 = vmatprep.subr.mxu0 0.0
    %1673 = vmatpush1.xpose.msra.mxu0 0.0
    %1674 = vmatprep.subr.mxu0 0.0
    %1675 = vmatpush1.xpose.msra.mxu0 0.0
    %1676 = vmatprep.subr.mxu0 0.0
    %1677 = vmatpush1.xpose.msra.mxu0 0.0
    %1678 = vmatprep.subr.mxu0 0.0
    %1679 = vmatpush1.xpose.msra.mxu0 0.0
    %1680 = vmatprep.subr.mxu0 0.0
    %1681 = vmatpush1.xpose.msra.mxu0 0.0
    %1682 = vmatprep.subr.mxu0 0.0
    %1683 = vmatpush1.xpose.msra.mxu0 0.0
    %1684 = vmatprep.subr.mxu0 0.0
    %1685 = vmatpush1.xpose.msra.mxu0 0.0
    %1686 = vmatprep.subr.mxu0 0.0
    %1687 = vmatpush1.xpose.msra.mxu0 0.0
    %1688 = vmatprep.subr.mxu0 0.0
    %1689 = vmatpush1.xpose.msra.mxu0 0.0
    %1690 = vmatprep.mubr.f32.mxu0 0.0
    %1691 = vmatmul.mubr.f32.gmra.mrb[0].mxu0 0.0
    %v1692 = vpop.f32.mrb[0].mxu0
    %v1693 = vadd.f32 %v1619, %v1692
    %v1694 = vpop.f32.mrb[0].mxu0
    %1695 = vdwg.mxu0
    %v1696 = vand.u32 %v73, 4294901760
    %1697 = vmatprep.subr.mxu0 %v1696
    %v1698 = vand.u32 %v72, 4294901760
    %1699 = vmatpush1.xpose.msra.mxu0 %v1698
    %1700 = vmatprep.subr.mxu0 0.0
    %1701 = vmatpush1.xpose.msra.mxu0 0.0
    %1702 = vmatprep.subr.mxu0 0.0
    %1703 = vmatpush1.xpose.msra.mxu0 0.0
    %1704 = vmatprep.subr.mxu0 0.0
    %1705 = vmatpush1.xpose.msra.mxu0 0.0
    %1706 = vmatprep.subr.mxu0 0.0
    %1707 = vmatpush1.xpose.msra.mxu0 0.0
    %1708 = vmatprep.subr.mxu0 0.0
    %1709 = vmatpush1.xpose.msra.mxu0 0.0
    %1710 = vmatprep.subr.mxu0 0.0
    %1711 = vmatpush1.xpose.msra.mxu0 0.0
    %1712 = vmatprep.subr.mxu0 0.0
    %1713 = vmatpush1.xpose.msra.mxu0 0.0
    %1714 = vmatprep.subr.mxu0 0.0
    %1715 = vmatpush1.xpose.msra.mxu0 0.0
    %1716 = vmatprep.subr.mxu0 0.0
    %1717 = vmatpush1.xpose.msra.mxu0 0.0
    %1718 = vmatprep.subr.mxu0 0.0
    %1719 = vmatpush1.xpose.msra.mxu0 0.0
    %1720 = vmatprep.subr.mxu0 0.0
    %1721 = vmatpush1.xpose.msra.mxu0 0.0
    %1722 = vmatprep.subr.mxu0 0.0
    %1723 = vmatpush1.xpose.msra.mxu0 0.0
    %1724 = vmatprep.subr.mxu0 0.0
    %1725 = vmatpush1.xpose.msra.mxu0 0.0
    %1726 = vmatprep.subr.mxu0 0.0
    %1727 = vmatpush1.xpose.msra.mxu0 0.0
    %1728 = vmatprep.subr.mxu0 0.0
    %1729 = vmatpush1.xpose.msra.mxu0 0.0
    %1730 = vmatprep.subr.mxu0 0.0
    %1731 = vmatpush1.xpose.msra.mxu0 0.0
    %1732 = vmatprep.subr.mxu0 0.0
    %1733 = vmatpush1.xpose.msra.mxu0 0.0
    %1734 = vmatprep.subr.mxu0 0.0
    %1735 = vmatpush1.xpose.msra.mxu0 0.0
    %1736 = vmatprep.subr.mxu0 0.0
    %1737 = vmatpush1.xpose.msra.mxu0 0.0
    %1738 = vmatprep.subr.mxu0 0.0
    %1739 = vmatpush1.xpose.msra.mxu0 0.0
    %1740 = vmatprep.subr.mxu0 0.0
    %1741 = vmatpush1.xpose.msra.mxu0 0.0
    %1742 = vmatprep.subr.mxu0 0.0
    %1743 = vmatpush1.xpose.msra.mxu0 0.0
    %1744 = vmatprep.subr.mxu0 0.0
    %1745 = vmatpush1.xpose.msra.mxu0 0.0
    %1746 = vmatprep.subr.mxu0 0.0
    %1747 = vmatpush1.xpose.msra.mxu0 0.0
    %1748 = vmatprep.subr.mxu0 0.0
    %1749 = vmatpush1.xpose.msra.mxu0 0.0
    %1750 = vmatprep.subr.mxu0 0.0
    %1751 = vmatpush1.xpose.msra.mxu0 0.0
    %1752 = vmatprep.subr.mxu0 0.0
    %1753 = vmatpush1.xpose.msra.mxu0 0.0
    %1754 = vmatprep.subr.mxu0 0.0
    %1755 = vmatpush1.xpose.msra.mxu0 0.0
    %1756 = vmatprep.subr.mxu0 0.0
    %1757 = vmatpush1.xpose.msra.mxu0 0.0
    %1758 = vmatprep.subr.mxu0 0.0
    %1759 = vmatpush1.xpose.msra.mxu0 0.0
    %1760 = vmatprep.subr.mxu0 0.0
    %1761 = vmatpush1.xpose.msra.mxu0 0.0
    %1762 = vmatprep.mubr.f32.mxu0 0.0
    %1763 = vmatmul.mubr.f32.gmra.mrb[0].mxu0 0.0
    %v1764 = vpop.f32.mrb[0].mxu0
    %v1765 = vadd.f32 %v1693, %v1764
    %v1766 = vpop.f32.mrb[0].mxu0
    %1767 = vdwg.mxu0
    %v1768 = vand.u32 %v73, 4294901760
    %v1769 = vsub.f32 %v73, %v1768
    %v1770 = vand.u32 %v1769, 4294901760
    %1771 = vmatprep.subr.mxu0 %v1770
    %v1772 = vand.u32 %v72, 4294901760
    %v1773 = vsub.f32 %v72, %v1772
    %v1774 = vand.u32 %v1773, 4294901760
    %1775 = vmatpush1.xpose.msra.mxu0 %v1774
    %1776 = vmatprep.subr.mxu0 0.0
    %1777 = vmatpush1.xpose.msra.mxu0 0.0
    %1778 = vmatprep.subr.mxu0 0.0
    %1779 = vmatpush1.xpose.msra.mxu0 0.0
    %1780 = vmatprep.subr.mxu0 0.0
    %1781 = vmatpush1.xpose.msra.mxu0 0.0
    %1782 = vmatprep.subr.mxu0 0.0
    %1783 = vmatpush1.xpose.msra.mxu0 0.0
    %1784 = vmatprep.subr.mxu0 0.0
    %1785 = vmatpush1.xpose.msra.mxu0 0.0
    %1786 = vmatprep.subr.mxu0 0.0
    %1787 = vmatpush1.xpose.msra.mxu0 0.0
    %1788 = vmatprep.subr.mxu0 0.0
    %1789 = vmatpush1.xpose.msra.mxu0 0.0
    %1790 = vmatprep.subr.mxu0 0.0
    %1791 = vmatpush1.xpose.msra.mxu0 0.0
    %1792 = vmatprep.subr.mxu0 0.0
    %1793 = vmatpush1.xpose.msra.mxu0 0.0
    %1794 = vmatprep.subr.mxu0 0.0
    %1795 = vmatpush1.xpose.msra.mxu0 0.0
    %1796 = vmatprep.subr.mxu0 0.0
    %1797 = vmatpush1.xpose.msra.mxu0 0.0
    %1798 = vmatprep.subr.mxu0 0.0
    %1799 = vmatpush1.xpose.msra.mxu0 0.0
    %1800 = vmatprep.subr.mxu0 0.0
    %1801 = vmatpush1.xpose.msra.mxu0 0.0
    %1802 = vmatprep.subr.mxu0 0.0
    %1803 = vmatpush1.xpose.msra.mxu0 0.0
    %1804 = vmatprep.subr.mxu0 0.0
    %1805 = vmatpush1.xpose.msra.mxu0 0.0
    %1806 = vmatprep.subr.mxu0 0.0
    %1807 = vmatpush1.xpose.msra.mxu0 0.0
    %1808 = vmatprep.subr.mxu0 0.0
    %1809 = vmatpush1.xpose.msra.mxu0 0.0
    %1810 = vmatprep.subr.mxu0 0.0
    %1811 = vmatpush1.xpose.msra.mxu0 0.0
    %1812 = vmatprep.subr.mxu0 0.0
    %1813 = vmatpush1.xpose.msra.mxu0 0.0
    %1814 = vmatprep.subr.mxu0 0.0
    %1815 = vmatpush1.xpose.msra.mxu0 0.0
    %1816 = vmatprep.subr.mxu0 0.0
    %1817 = vmatpush1.xpose.msra.mxu0 0.0
    %1818 = vmatprep.subr.mxu0 0.0
    %1819 = vmatpush1.xpose.msra.mxu0 0.0
    %1820 = vmatprep.subr.mxu0 0.0
    %1821 = vmatpush1.xpose.msra.mxu0 0.0
    %1822 = vmatprep.subr.mxu0 0.0
    %1823 = vmatpush1.xpose.msra.mxu0 0.0
    %1824 = vmatprep.subr.mxu0 0.0
    %1825 = vmatpush1.xpose.msra.mxu0 0.0
    %1826 = vmatprep.subr.mxu0 0.0
    %1827 = vmatpush1.xpose.msra.mxu0 0.0
    %1828 = vmatprep.subr.mxu0 0.0
    %1829 = vmatpush1.xpose.msra.mxu0 0.0
    %1830 = vmatprep.subr.mxu0 0.0
    %1831 = vmatpush1.xpose.msra.mxu0 0.0
    %1832 = vmatprep.subr.mxu0 0.0
    %1833 = vmatpush1.xpose.msra.mxu0 0.0
    %1834 = vmatprep.subr.mxu0 0.0
    %1835 = vmatpush1.xpose.msra.mxu0 0.0
    %1836 = vmatprep.subr.mxu0 0.0
    %1837 = vmatpush1.xpose.msra.mxu0 0.0
    %1838 = vmatprep.mubr.f32.mxu0 1.0
    %1839 = vmatmul.mubr.f32.gmra.mrb[0].mxu0 1.0
    %v1840 = vpop.f32.mrb[0].mxu0
    %v1841 = vadd.f32 %v1765, %v1840
    %v1842 = vpop.f32.mrb[0].mxu0
    %1843 = vdwg.mxu0
    %v1844 = vand.u32 %v73, 4294901760
    %1845 = vmatprep.subr.mxu0 %v1844
    %v1846 = vand.u32 %v72, 4294901760
    %1847 = vmatpush1.xpose.msra.mxu0 %v1846
    %1848 = vmatprep.subr.mxu0 0.0
    %1849 = vmatpush1.xpose.msra.mxu0 0.0
    %1850 = vmatprep.subr.mxu0 0.0
    %1851 = vmatpush1.xpose.msra.mxu0 0.0
    %1852 = vmatprep.subr.mxu0 0.0
    %1853 = vmatpush1.xpose.msra.mxu0 0.0
    %1854 = vmatprep.subr.mxu0 0.0
    %1855 = vmatpush1.xpose.msra.mxu0 0.0
    %1856 = vmatprep.subr.mxu0 0.0
    %1857 = vmatpush1.xpose.msra.mxu0 0.0
    %1858 = vmatprep.subr.mxu0 0.0
    %1859 = vmatpush1.xpose.msra.mxu0 0.0
    %1860 = vmatprep.subr.mxu0 0.0
    %1861 = vmatpush1.xpose.msra.mxu0 0.0
    %1862 = vmatprep.subr.mxu0 0.0
    %1863 = vmatpush1.xpose.msra.mxu0 0.0
    %1864 = vmatprep.subr.mxu0 0.0
    %1865 = vmatpush1.xpose.msra.mxu0 0.0
    %1866 = vmatprep.subr.mxu0 0.0
    %1867 = vmatpush1.xpose.msra.mxu0 0.0
    %1868 = vmatprep.subr.mxu0 0.0
    %1869 = vmatpush1.xpose.msra.mxu0 0.0
    %1870 = vmatprep.subr.mxu0 0.0
    %1871 = vmatpush1.xpose.msra.mxu0 0.0
    %1872 = vmatprep.subr.mxu0 0.0
    %1873 = vmatpush1.xpose.msra.mxu0 0.0
    %1874 = vmatprep.subr.mxu0 0.0
    %1875 = vmatpush1.xpose.msra.mxu0 0.0
    %1876 = vmatprep.subr.mxu0 0.0
    %1877 = vmatpush1.xpose.msra.mxu0 0.0
    %1878 = vmatprep.subr.mxu0 0.0
    %1879 = vmatpush1.xpose.msra.mxu0 0.0
    %1880 = vmatprep.subr.mxu0 0.0
    %1881 = vmatpush1.xpose.msra.mxu0 0.0
    %1882 = vmatprep.subr.mxu0 0.0
    %1883 = vmatpush1.xpose.msra.mxu0 0.0
    %1884 = vmatprep.subr.mxu0 0.0
    %1885 = vmatpush1.xpose.msra.mxu0 0.0
    %1886 = vmatprep.subr.mxu0 0.0
    %1887 = vmatpush1.xpose.msra.mxu0 0.0
    %1888 = vmatprep.subr.mxu0 0.0
    %1889 = vmatpush1.xpose.msra.mxu0 0.0
    %1890 = vmatprep.subr.mxu0 0.0
    %1891 = vmatpush1.xpose.msra.mxu0 0.0
    %1892 = vmatprep.subr.mxu0 0.0
    %1893 = vmatpush1.xpose.msra.mxu0 0.0
    %1894 = vmatprep.subr.mxu0 0.0
    %1895 = vmatpush1.xpose.msra.mxu0 0.0
    %1896 = vmatprep.subr.mxu0 0.0
    %1897 = vmatpush1.xpose.msra.mxu0 0.0
    %1898 = vmatprep.subr.mxu0 0.0
    %1899 = vmatpush1.xpose.msra.mxu0 0.0
    %1900 = vmatprep.subr.mxu0 0.0
    %1901 = vmatpush1.xpose.msra.mxu0 0.0
    %1902 = vmatprep.subr.mxu0 0.0
    %1903 = vmatpush1.xpose.msra.mxu0 0.0
    %1904 = vmatprep.subr.mxu0 0.0
    %1905 = vmatpush1.xpose.msra.mxu0 0.0
    %1906 = vmatprep.subr.mxu0 0.0
    %1907 = vmatpush1.xpose.msra.mxu0 0.0
    %1908 = vmatprep.subr.mxu0 0.0
    %1909 = vmatpush1.xpose.msra.mxu0 0.0
    %1910 = vmatprep.mubr.f32.mxu0 1.0
    %1911 = vmatmul.mubr.f32.gmra.mrb[0].mxu0 1.0
    %v1912 = vpop.f32.mrb[0].mxu0
    %v1913 = vadd.f32 %v1841, %v1912
    %v1914 = vpop.f32.mrb[0].mxu0
    %1915 = vdwg.mxu0
    %v1916 = vrcp.pop %v1467
    %v1917 = vmul.f32 1.0, %v1916
    %v1918 = vrcp.pop %v1913
    %v1919 = vmul.f32 1.0, %v1918
    %v1920 = vlaneseq
    %v1921 = vshrl.u32 %v1920, 7
    %v1922 = vsub.s32 0, %v1921
    %v1923 = vrot.slane %v1917, %v1922
    %v1924 = vlaneseq
    %v1925 = vshrl.u32 %v1924, 7
    %v1926 = vsub.s32 0, %v1925
    %v1927 = vrot.slane %v1919, %v1926
    %v1928 = vmul.f32 %v546, %v1923
    %v1929 = vmul.f32 %v1021, %v1927
    %vm1930 = vcmask 31744
    %v1932 = vsel %vm1930, %v1928, 0
    %vm1934 = vcmask 1043456
    %v1936 = vsel %vm1934, %v70, 0
    %v1939 = vsel %vm1934, %v71, 0
    %v1941 = vand.u32 %v1939, 4294901760
    %1942 = vmatprep.subr.mxu0 %v1941
    %v1943 = vand.u32 %v1936, 4294901760
    %1944 = vmatpush1.msra.mxu0 %v1943
    %1945 = vmatprep.subr.mxu0 0.0
    %1946 = vmatpush1.msra.mxu0 0.0
    %1947 = vmatprep.subr.mxu0 0.0
    %1948 = vmatpush1.msra.mxu0 0.0
    %1949 = vmatprep.subr.mxu0 0.0
    %1950 = vmatpush1.msra.mxu0 0.0
    %1951 = vmatprep.subr.mxu0 0.0
    %1952 = vmatpush1.msra.mxu0 0.0
    %1953 = vmatprep.subr.mxu0 0.0
    %1954 = vmatpush1.msra.mxu0 0.0
    %1955 = vmatprep.subr.mxu0 0.0
    %1956 = vmatpush1.msra.mxu0 0.0
    %1957 = vmatprep.subr.mxu0 0.0
    %1958 = vmatpush1.msra.mxu0 0.0
    %1959 = vmatprep.subr.mxu0 0.0
    %1960 = vmatpush1.msra.mxu0 0.0
    %1961 = vmatprep.subr.mxu0 0.0
    %1962 = vmatpush1.msra.mxu0 0.0
    %1963 = vmatprep.subr.mxu0 0.0
    %1964 = vmatpush1.msra.mxu0 0.0
    %1965 = vmatprep.subr.mxu0 0.0
    %1966 = vmatpush1.msra.mxu0 0.0
    %1967 = vmatprep.subr.mxu0 0.0
    %1968 = vmatpush1.msra.mxu0 0.0
    %1969 = vmatprep.subr.mxu0 0.0
    %1970 = vmatpush1.msra.mxu0 0.0
    %1971 = vmatprep.subr.mxu0 0.0
    %1972 = vmatpush1.msra.mxu0 0.0
    %1973 = vmatprep.subr.mxu0 0.0
    %1974 = vmatpush1.msra.mxu0 0.0
    %1975 = vmatprep.subr.mxu0 0.0
    %1976 = vmatpush1.msra.mxu0 0.0
    %1977 = vmatprep.subr.mxu0 0.0
    %1978 = vmatpush1.msra.mxu0 0.0
    %1979 = vmatprep.subr.mxu0 0.0
    %1980 = vmatpush1.msra.mxu0 0.0
    %1981 = vmatprep.subr.mxu0 0.0
    %1982 = vmatpush1.msra.mxu0 0.0
    %1983 = vmatprep.subr.mxu0 0.0
    %1984 = vmatpush1.msra.mxu0 0.0
    %1985 = vmatprep.subr.mxu0 0.0
    %1986 = vmatpush1.msra.mxu0 0.0
    %1987 = vmatprep.subr.mxu0 0.0
    %1988 = vmatpush1.msra.mxu0 0.0
    %1989 = vmatprep.subr.mxu0 0.0
    %1990 = vmatpush1.msra.mxu0 0.0
    %1991 = vmatprep.subr.mxu0 0.0
    %1992 = vmatpush1.msra.mxu0 0.0
    %1993 = vmatprep.subr.mxu0 0.0
    %1994 = vmatpush1.msra.mxu0 0.0
    %1995 = vmatprep.subr.mxu0 0.0
    %1996 = vmatpush1.msra.mxu0 0.0
    %1997 = vmatprep.subr.mxu0 0.0
    %1998 = vmatpush1.msra.mxu0 0.0
    %1999 = vmatprep.subr.mxu0 0.0
    %2000 = vmatpush1.msra.mxu0 0.0
    %2001 = vmatprep.subr.mxu0 0.0
    %2002 = vmatpush1.msra.mxu0 0.0
    %2003 = vmatprep.subr.mxu0 0.0
    %2004 = vmatpush1.msra.mxu0 0.0
    %2005 = vmatprep.subr.mxu0 0.0
    %2006 = vmatpush1.msra.mxu0 0.0
    %2007 = vmatprep.mubr.f32.mxu0 0.0
    %v2008 = vand.u32 %v1932, 4294901760
    %v2009 = vsub.f32 %v1932, %v2008
    %v2010 = vand.u32 %v2009, 4294901760
    %v2011 = vsub.f32 %v2009, %v2010
    %v2012 = vand.u32 %v2011, 4294901760
    %2013 = vmatmul.mubr.f32.gmra.mrb[0].mxu0 %v2012
    %v2014 = vpop.f32.mrb[0].mxu0
    %v2015 = vadd.f32 0.0, %v2014
    %v2016 = vpop.f32.mrb[0].mxu0
    %v2017 = vadd.f32 0.0, %v2016
    %2018 = vdwg.mxu0
    %v2019 = vand.u32 %v1939, 4294901760
    %v2020 = vsub.f32 %v1939, %v2019
    %v2021 = vand.u32 %v2020, 4294901760
    %v2022 = vsub.f32 %v2020, %v2021
    %v2023 = vand.u32 %v2022, 4294901760
    %2024 = vmatprep.subr.mxu0 %v2023
    %v2025 = vand.u32 %v1936, 4294901760
    %v2026 = vsub.f32 %v1936, %v2025
    %v2027 = vand.u32 %v2026, 4294901760
    %v2028 = vsub.f32 %v2026, %v2027
    %v2029 = vand.u32 %v2028, 4294901760
    %2030 = vmatpush1.msra.mxu0 %v2029
    %2031 = vmatprep.subr.mxu0 0.0
    %2032 = vmatpush1.msra.mxu0 0.0
    %2033 = vmatprep.subr.mxu0 0.0
    %2034 = vmatpush1.msra.mxu0 0.0
    %2035 = vmatprep.subr.mxu0 0.0
    %2036 = vmatpush1.msra.mxu0 0.0
    %2037 = vmatprep.subr.mxu0 0.0
    %2038 = vmatpush1.msra.mxu0 0.0
    %2039 = vmatprep.subr.mxu0 0.0
    %2040 = vmatpush1.msra.mxu0 0.0
    %2041 = vmatprep.subr.mxu0 0.0
    %2042 = vmatpush1.msra.mxu0 0.0
    %2043 = vmatprep.subr.mxu0 0.0
    %2044 = vmatpush1.msra.mxu0 0.0
    %2045 = vmatprep.subr.mxu0 0.0
    %2046 = vmatpush1.msra.mxu0 0.0
    %2047 = vmatprep.subr.mxu0 0.0
    %2048 = vmatpush1.msra.mxu0 0.0
    %2049 = vmatprep.subr.mxu0 0.0
    %2050 = vmatpush1.msra.mxu0 0.0
    %2051 = vmatprep.subr.mxu0 0.0
    %2052 = vmatpush1.msra.mxu0 0.0
    %2053 = vmatprep.subr.mxu0 0.0
    %2054 = vmatpush1.msra.mxu0 0.0
    %2055 = vmatprep.subr.mxu0 0.0
    %2056 = vmatpush1.msra.mxu0 0.0
    %2057 = vmatprep.subr.mxu0 0.0
    %2058 = vmatpush1.msra.mxu0 0.0
    %2059 = vmatprep.subr.mxu0 0.0
    %2060 = vmatpush1.msra.mxu0 0.0
    %2061 = vmatprep.subr.mxu0 0.0
    %2062 = vmatpush1.msra.mxu0 0.0
    %2063 = vmatprep.subr.mxu0 0.0
    %2064 = vmatpush1.msra.mxu0 0.0
    %2065 = vmatprep.subr.mxu0 0.0
    %2066 = vmatpush1.msra.mxu0 0.0
    %2067 = vmatprep.subr.mxu0 0.0
    %2068 = vmatpush1.msra.mxu0 0.0
    %2069 = vmatprep.subr.mxu0 0.0
    %2070 = vmatpush1.msra.mxu0 0.0
    %2071 = vmatprep.subr.mxu0 0.0
    %2072 = vmatpush1.msra.mxu0 0.0
    %2073 = vmatprep.subr.mxu0 0.0
    %2074 = vmatpush1.msra.mxu0 0.0
    %2075 = vmatprep.subr.mxu0 0.0
    %2076 = vmatpush1.msra.mxu0 0.0
    %2077 = vmatprep.subr.mxu0 0.0
    %2078 = vmatpush1.msra.mxu0 0.0
    %2079 = vmatprep.subr.mxu0 0.0
    %2080 = vmatpush1.msra.mxu0 0.0
    %2081 = vmatprep.subr.mxu0 0.0
    %2082 = vmatpush1.msra.mxu0 0.0
    %2083 = vmatprep.subr.mxu0 0.0
    %2084 = vmatpush1.msra.mxu0 0.0
    %2085 = vmatprep.subr.mxu0 0.0
    %2086 = vmatpush1.msra.mxu0 0.0
    %2087 = vmatprep.subr.mxu0 0.0
    %2088 = vmatpush1.msra.mxu0 0.0
    %2089 = vmatprep.subr.mxu0 0.0
    %2090 = vmatpush1.msra.mxu0 0.0
    %2091 = vmatprep.subr.mxu0 0.0
    %2092 = vmatpush1.msra.mxu0 0.0
    %2093 = vmatprep.mubr.f32.mxu0 0.0
    %v2094 = vand.u32 %v1932, 4294901760
    %2095 = vmatmul.mubr.f32.gmra.mrb[0].mxu0 %v2094
    %v2096 = vpop.f32.mrb[0].mxu0
    %v2097 = vadd.f32 %v2015, %v2096
    %v2098 = vpop.f32.mrb[0].mxu0
    %v2099 = vadd.f32 %v2017, %v2098
    %2100 = vdwg.mxu0
    %v2101 = vand.u32 %v1939, 4294901760
    %v2102 = vsub.f32 %v1939, %v2101
    %2103 = vmatprep.subr.mxu0 %v2102
    %v2104 = vand.u32 %v1936, 4294901760
    %v2105 = vsub.f32 %v1936, %v2104
    %2106 = vmatpush1.msra.mxu0 %v2105
    %2107 = vmatprep.subr.mxu0 0.0
    %2108 = vmatpush1.msra.mxu0 0.0
    %2109 = vmatprep.subr.mxu0 0.0
    %2110 = vmatpush1.msra.mxu0 0.0
    %2111 = vmatprep.subr.mxu0 0.0
    %2112 = vmatpush1.msra.mxu0 0.0
    %2113 = vmatprep.subr.mxu0 0.0
    %2114 = vmatpush1.msra.mxu0 0.0
    %2115 = vmatprep.subr.mxu0 0.0
    %2116 = vmatpush1.msra.mxu0 0.0
    %2117 = vmatprep.subr.mxu0 0.0
    %2118 = vmatpush1.msra.mxu0 0.0
    %2119 = vmatprep.subr.mxu0 0.0
    %2120 = vmatpush1.msra.mxu0 0.0
    %2121 = vmatprep.subr.mxu0 0.0
    %2122 = vmatpush1.msra.mxu0 0.0
    %2123 = vmatprep.subr.mxu0 0.0
    %2124 = vmatpush1.msra.mxu0 0.0
    %2125 = vmatprep.subr.mxu0 0.0
    %2126 = vmatpush1.msra.mxu0 0.0
    %2127 = vmatprep.subr.mxu0 0.0
    %2128 = vmatpush1.msra.mxu0 0.0
    %2129 = vmatprep.subr.mxu0 0.0
    %2130 = vmatpush1.msra.mxu0 0.0
    %2131 = vmatprep.subr.mxu0 0.0
    %2132 = vmatpush1.msra.mxu0 0.0
    %2133 = vmatprep.subr.mxu0 0.0
    %2134 = vmatpush1.msra.mxu0 0.0
    %2135 = vmatprep.subr.mxu0 0.0
    %2136 = vmatpush1.msra.mxu0 0.0
    %2137 = vmatprep.subr.mxu0 0.0
    %2138 = vmatpush1.msra.mxu0 0.0
    %2139 = vmatprep.subr.mxu0 0.0
    %2140 = vmatpush1.msra.mxu0 0.0
    %2141 = vmatprep.subr.mxu0 0.0
    %2142 = vmatpush1.msra.mxu0 0.0
    %2143 = vmatprep.subr.mxu0 0.0
    %2144 = vmatpush1.msra.mxu0 0.0
    %2145 = vmatprep.subr.mxu0 0.0
    %2146 = vmatpush1.msra.mxu0 0.0
    %2147 = vmatprep.subr.mxu0 0.0
    %2148 = vmatpush1.msra.mxu0 0.0
    %2149 = vmatprep.subr.mxu0 0.0
    %2150 = vmatpush1.msra.mxu0 0.0
    %2151 = vmatprep.subr.mxu0 0.0
    %2152 = vmatpush1.msra.mxu0 0.0
    %2153 = vmatprep.subr.mxu0 0.0
    %2154 = vmatpush1.msra.mxu0 0.0
    %2155 = vmatprep.subr.mxu0 0.0
    %2156 = vmatpush1.msra.mxu0 0.0
    %2157 = vmatprep.subr.mxu0 0.0
    %2158 = vmatpush1.msra.mxu0 0.0
    %2159 = vmatprep.subr.mxu0 0.0
    %2160 = vmatpush1.msra.mxu0 0.0
    %2161 = vmatprep.subr.mxu0 0.0
    %2162 = vmatpush1.msra.mxu0 0.0
    %2163 = vmatprep.subr.mxu0 0.0
    %2164 = vmatpush1.msra.mxu0 0.0
    %2165 = vmatprep.subr.mxu0 0.0
    %2166 = vmatpush1.msra.mxu0 0.0
    %2167 = vmatprep.subr.mxu0 0.0
    %2168 = vmatpush1.msra.mxu0 0.0
    %2169 = vmatprep.mubr.f32.mxu0 0.0
    %v2170 = vand.u32 %v1932, 4294901760
    %v2171 = vsub.f32 %v1932, %v2170
    %2172 = vmatmul.mubr.f32.gmra.mrb[0].mxu0 %v2171
    %v2173 = vpop.f32.mrb[0].mxu0
    %v2174 = vadd.f32 %v2097, %v2173
    %v2175 = vpop.f32.mrb[0].mxu0
    %v2176 = vadd.f32 %v2099, %v2175
    %2177 = vdwg.mxu0
    %v2178 = vand.u32 %v1939, 4294901760
    %2179 = vmatprep.subr.mxu0 %v2178
    %v2180 = vand.u32 %v1936, 4294901760
    %2181 = vmatpush1.msra.mxu0 %v2180
    %2182 = vmatprep.subr.mxu0 0.0
    %2183 = vmatpush1.msra.mxu0 0.0
    %2184 = vmatprep.subr.mxu0 0.0
    %2185 = vmatpush1.msra.mxu0 0.0
    %2186 = vmatprep.subr.mxu0 0.0
    %2187 = vmatpush1.msra.mxu0 0.0
    %2188 = vmatprep.subr.mxu0 0.0
    %2189 = vmatpush1.msra.mxu0 0.0
    %2190 = vmatprep.subr.mxu0 0.0
    %2191 = vmatpush1.msra.mxu0 0.0
    %2192 = vmatprep.subr.mxu0 0.0
    %2193 = vmatpush1.msra.mxu0 0.0
    %2194 = vmatprep.subr.mxu0 0.0
    %2195 = vmatpush1.msra.mxu0 0.0
    %2196 = vmatprep.subr.mxu0 0.0
    %2197 = vmatpush1.msra.mxu0 0.0
    %2198 = vmatprep.subr.mxu0 0.0
    %2199 = vmatpush1.msra.mxu0 0.0
    %2200 = vmatprep.subr.mxu0 0.0
    %2201 = vmatpush1.msra.mxu0 0.0
    %2202 = vmatprep.subr.mxu0 0.0
    %2203 = vmatpush1.msra.mxu0 0.0
    %2204 = vmatprep.subr.mxu0 0.0
    %2205 = vmatpush1.msra.mxu0 0.0
    %2206 = vmatprep.subr.mxu0 0.0
    %2207 = vmatpush1.msra.mxu0 0.0
    %2208 = vmatprep.subr.mxu0 0.0
    %2209 = vmatpush1.msra.mxu0 0.0
    %2210 = vmatprep.subr.mxu0 0.0
    %2211 = vmatpush1.msra.mxu0 0.0
    %2212 = vmatprep.subr.mxu0 0.0
    %2213 = vmatpush1.msra.mxu0 0.0
    %2214 = vmatprep.subr.mxu0 0.0
    %2215 = vmatpush1.msra.mxu0 0.0
    %2216 = vmatprep.subr.mxu0 0.0
    %2217 = vmatpush1.msra.mxu0 0.0
    %2218 = vmatprep.subr.mxu0 0.0
    %2219 = vmatpush1.msra.mxu0 0.0
    %2220 = vmatprep.subr.mxu0 0.0
    %2221 = vmatpush1.msra.mxu0 0.0
    %2222 = vmatprep.subr.mxu0 0.0
    %2223 = vmatpush1.msra.mxu0 0.0
    %2224 = vmatprep.subr.mxu0 0.0
    %2225 = vmatpush1.msra.mxu0 0.0
    %2226 = vmatprep.subr.mxu0 0.0
    %2227 = vmatpush1.msra.mxu0 0.0
    %2228 = vmatprep.subr.mxu0 0.0
    %2229 = vmatpush1.msra.mxu0 0.0
    %2230 = vmatprep.subr.mxu0 0.0
    %2231 = vmatpush1.msra.mxu0 0.0
    %2232 = vmatprep.subr.mxu0 0.0
    %2233 = vmatpush1.msra.mxu0 0.0
    %2234 = vmatprep.subr.mxu0 0.0
    %2235 = vmatpush1.msra.mxu0 0.0
    %2236 = vmatprep.subr.mxu0 0.0
    %2237 = vmatpush1.msra.mxu0 0.0
    %2238 = vmatprep.subr.mxu0 0.0
    %2239 = vmatpush1.msra.mxu0 0.0
    %2240 = vmatprep.subr.mxu0 0.0
    %2241 = vmatpush1.msra.mxu0 0.0
    %2242 = vmatprep.subr.mxu0 0.0
    %2243 = vmatpush1.msra.mxu0 0.0
    %2244 = vmatprep.mubr.f32.mxu0 0.0
    %v2245 = vand.u32 %v1932, 4294901760
    %v2246 = vsub.f32 %v1932, %v2245
    %v2247 = vand.u32 %v2246, 4294901760
    %2248 = vmatmul.mubr.f32.gmra.mrb[0].mxu0 %v2247
    %v2249 = vpop.f32.mrb[0].mxu0
    %v2250 = vadd.f32 %v2174, %v2249
    %v2251 = vpop.f32.mrb[0].mxu0
    %v2252 = vadd.f32 %v2176, %v2251
    %2253 = vdwg.mxu0
    %v2254 = vand.u32 %v1939, 4294901760
    %v2255 = vsub.f32 %v1939, %v2254
    %v2256 = vand.u32 %v2255, 4294901760
    %2257 = vmatprep.subr.mxu0 %v2256
    %v2258 = vand.u32 %v1936, 4294901760
    %v2259 = vsub.f32 %v1936, %v2258
    %v2260 = vand.u32 %v2259, 4294901760
    %2261 = vmatpush1.msra.mxu0 %v2260
    %2262 = vmatprep.subr.mxu0 0.0
    %2263 = vmatpush1.msra.mxu0 0.0
    %2264 = vmatprep.subr.mxu0 0.0
    %2265 = vmatpush1.msra.mxu0 0.0
    %2266 = vmatprep.subr.mxu0 0.0
    %2267 = vmatpush1.msra.mxu0 0.0
    %2268 = vmatprep.subr.mxu0 0.0
    %2269 = vmatpush1.msra.mxu0 0.0
    %2270 = vmatprep.subr.mxu0 0.0
    %2271 = vmatpush1.msra.mxu0 0.0
    %2272 = vmatprep.subr.mxu0 0.0
    %2273 = vmatpush1.msra.mxu0 0.0
    %2274 = vmatprep.subr.mxu0 0.0
    %2275 = vmatpush1.msra.mxu0 0.0
    %2276 = vmatprep.subr.mxu0 0.0
    %2277 = vmatpush1.msra.mxu0 0.0
    %2278 = vmatprep.subr.mxu0 0.0
    %2279 = vmatpush1.msra.mxu0 0.0
    %2280 = vmatprep.subr.mxu0 0.0
    %2281 = vmatpush1.msra.mxu0 0.0
    %2282 = vmatprep.subr.mxu0 0.0
    %2283 = vmatpush1.msra.mxu0 0.0
    %2284 = vmatprep.subr.mxu0 0.0
    %2285 = vmatpush1.msra.mxu0 0.0
    %2286 = vmatprep.subr.mxu0 0.0
    %2287 = vmatpush1.msra.mxu0 0.0
    %2288 = vmatprep.subr.mxu0 0.0
    %2289 = vmatpush1.msra.mxu0 0.0
    %2290 = vmatprep.subr.mxu0 0.0
    %2291 = vmatpush1.msra.mxu0 0.0
    %2292 = vmatprep.subr.mxu0 0.0
    %2293 = vmatpush1.msra.mxu0 0.0
    %2294 = vmatprep.subr.mxu0 0.0
    %2295 = vmatpush1.msra.mxu0 0.0
    %2296 = vmatprep.subr.mxu0 0.0
    %2297 = vmatpush1.msra.mxu0 0.0
    %2298 = vmatprep.subr.mxu0 0.0
    %2299 = vmatpush1.msra.mxu0 0.0
    %2300 = vmatprep.subr.mxu0 0.0
    %2301 = vmatpush1.msra.mxu0 0.0
    %2302 = vmatprep.subr.mxu0 0.0
    %2303 = vmatpush1.msra.mxu0 0.0
    %2304 = vmatprep.subr.mxu0 0.0
    %2305 = vmatpush1.msra.mxu0 0.0
    %2306 = vmatprep.subr.mxu0 0.0
    %2307 = vmatpush1.msra.mxu0 0.0
    %2308 = vmatprep.subr.mxu0 0.0
    %2309 = vmatpush1.msra.mxu0 0.0
    %2310 = vmatprep.subr.mxu0 0.0
    %2311 = vmatpush1.msra.mxu0 0.0
    %2312 = vmatprep.subr.mxu0 0.0
    %2313 = vmatpush1.msra.mxu0 0.0
    %2314 = vmatprep.subr.mxu0 0.0
    %2315 = vmatpush1.msra.mxu0 0.0
    %2316 = vmatprep.subr.mxu0 0.0
    %2317 = vmatpush1.msra.mxu0 0.0
    %2318 = vmatprep.subr.mxu0 0.0
    %2319 = vmatpush1.msra.mxu0 0.0
    %2320 = vmatprep.subr.mxu0 0.0
    %2321 = vmatpush1.msra.mxu0 0.0
    %2322 = vmatprep.subr.mxu0 0.0
    %2323 = vmatpush1.msra.mxu0 0.0
    %2324 = vmatprep.mubr.f32.mxu0 0.0
    %v2325 = vand.u32 %v1932, 4294901760
    %2326 = vmatmul.mubr.f32.gmra.mrb[0].mxu0 %v2325
    %v2327 = vpop.f32.mrb[0].mxu0
    %v2328 = vadd.f32 %v2250, %v2327
    %v2329 = vpop.f32.mrb[0].mxu0
    %v2330 = vadd.f32 %v2252, %v2329
    %2331 = vdwg.mxu0
    %v2332 = vand.u32 %v1939, 4294901760
    %2333 = vmatprep.subr.mxu0 %v2332
    %v2334 = vand.u32 %v1936, 4294901760
    %2335 = vmatpush1.msra.mxu0 %v2334
    %2336 = vmatprep.subr.mxu0 0.0
    %2337 = vmatpush1.msra.mxu0 0.0
    %2338 = vmatprep.subr.mxu0 0.0
    %2339 = vmatpush1.msra.mxu0 0.0
    %2340 = vmatprep.subr.mxu0 0.0
    %2341 = vmatpush1.msra.mxu0 0.0
    %2342 = vmatprep.subr.mxu0 0.0
    %2343 = vmatpush1.msra.mxu0 0.0
    %2344 = vmatprep.subr.mxu0 0.0
    %2345 = vmatpush1.msra.mxu0 0.0
    %2346 = vmatprep.subr.mxu0 0.0
    %2347 = vmatpush1.msra.mxu0 0.0
    %2348 = vmatprep.subr.mxu0 0.0
    %2349 = vmatpush1.msra.mxu0 0.0
    %2350 = vmatprep.subr.mxu0 0.0
    %2351 = vmatpush1.msra.mxu0 0.0
    %2352 = vmatprep.subr.mxu0 0.0
    %2353 = vmatpush1.msra.mxu0 0.0
    %2354 = vmatprep.subr.mxu0 0.0
    %2355 = vmatpush1.msra.mxu0 0.0
    %2356 = vmatprep.subr.mxu0 0.0
    %2357 = vmatpush1.msra.mxu0 0.0
    %2358 = vmatprep.subr.mxu0 0.0
    %2359 = vmatpush1.msra.mxu0 0.0
    %2360 = vmatprep.subr.mxu0 0.0
    %2361 = vmatpush1.msra.mxu0 0.0
    %2362 = vmatprep.subr.mxu0 0.0
    %2363 = vmatpush1.msra.mxu0 0.0
    %2364 = vmatprep.subr.mxu0 0.0
    %2365 = vmatpush1.msra.mxu0 0.0
    %2366 = vmatprep.subr.mxu0 0.0
    %2367 = vmatpush1.msra.mxu0 0.0
    %2368 = vmatprep.subr.mxu0 0.0
    %2369 = vmatpush1.msra.mxu0 0.0
    %2370 = vmatprep.subr.mxu0 0.0
    %2371 = vmatpush1.msra.mxu0 0.0
    %2372 = vmatprep.subr.mxu0 0.0
    %2373 = vmatpush1.msra.mxu0 0.0
    %2374 = vmatprep.subr.mxu0 0.0
    %2375 = vmatpush1.msra.mxu0 0.0
    %2376 = vmatprep.subr.mxu0 0.0
    %2377 = vmatpush1.msra.mxu0 0.0
    %2378 = vmatprep.subr.mxu0 0.0
    %2379 = vmatpush1.msra.mxu0 0.0
    %2380 = vmatprep.subr.mxu0 0.0
    %2381 = vmatpush1.msra.mxu0 0.0
    %2382 = vmatprep.subr.mxu0 0.0
    %2383 = vmatpush1.msra.mxu0 0.0
    %2384 = vmatprep.subr.mxu0 0.0
    %2385 = vmatpush1.msra.mxu0 0.0
    %2386 = vmatprep.subr.mxu0 0.0
    %2387 = vmatpush1.msra.mxu0 0.0
    %2388 = vmatprep.subr.mxu0 0.0
    %2389 = vmatpush1.msra.mxu0 0.0
    %2390 = vmatprep.subr.mxu0 0.0
    %2391 = vmatpush1.msra.mxu0 0.0
    %2392 = vmatprep.subr.mxu0 0.0
    %2393 = vmatpush1.msra.mxu0 0.0
    %2394 = vmatprep.subr.mxu0 0.0
    %2395 = vmatpush1.msra.mxu0 0.0
    %2396 = vmatprep.subr.mxu0 0.0
    %2397 = vmatpush1.msra.mxu0 0.0
    %2398 = vmatprep.mubr.f32.mxu0 0.0
    %v2399 = vand.u32 %v1932, 4294901760
    %2400 = vmatmul.mubr.f32.gmra.mrb[0].mxu0 %v2399
    %v2401 = vpop.f32.mrb[0].mxu0
    %v2402 = vadd.f32 %v2328, %v2401
    %v2403 = vpop.f32.mrb[0].mxu0
    %v2404 = vadd.f32 %v2330, %v2403
    %2405 = vdwg.mxu0
    %v2407 = vsel %vm1930, %v1929, 0
    %v2410 = vsel %vm1934, %v72, 0
    %v2413 = vsel %vm1934, %v73, 0
    %v2415 = vand.u32 %v2413, 4294901760
    %2416 = vmatprep.subr.mxu0 %v2415
    %v2417 = vand.u32 %v2410, 4294901760
    %2418 = vmatpush1.msra.mxu0 %v2417
    %2419 = vmatprep.subr.mxu0 0.0
    %2420 = vmatpush1.msra.mxu0 0.0
    %2421 = vmatprep.subr.mxu0 0.0
    %2422 = vmatpush1.msra.mxu0 0.0
    %2423 = vmatprep.subr.mxu0 0.0
    %2424 = vmatpush1.msra.mxu0 0.0
    %2425 = vmatprep.subr.mxu0 0.0
    %2426 = vmatpush1.msra.mxu0 0.0
    %2427 = vmatprep.subr.mxu0 0.0
    %2428 = vmatpush1.msra.mxu0 0.0
    %2429 = vmatprep.subr.mxu0 0.0
    %2430 = vmatpush1.msra.mxu0 0.0
    %2431 = vmatprep.subr.mxu0 0.0
    %2432 = vmatpush1.msra.mxu0 0.0
    %2433 = vmatprep.subr.mxu0 0.0
    %2434 = vmatpush1.msra.mxu0 0.0
    %2435 = vmatprep.subr.mxu0 0.0
    %2436 = vmatpush1.msra.mxu0 0.0
    %2437 = vmatprep.subr.mxu0 0.0
    %2438 = vmatpush1.msra.mxu0 0.0
    %2439 = vmatprep.subr.mxu0 0.0
    %2440 = vmatpush1.msra.mxu0 0.0
    %2441 = vmatprep.subr.mxu0 0.0
    %2442 = vmatpush1.msra.mxu0 0.0
    %2443 = vmatprep.subr.mxu0 0.0
    %2444 = vmatpush1.msra.mxu0 0.0
    %2445 = vmatprep.subr.mxu0 0.0
    %2446 = vmatpush1.msra.mxu0 0.0
    %2447 = vmatprep.subr.mxu0 0.0
    %2448 = vmatpush1.msra.mxu0 0.0
    %2449 = vmatprep.subr.mxu0 0.0
    %2450 = vmatpush1.msra.mxu0 0.0
    %2451 = vmatprep.subr.mxu0 0.0
    %2452 = vmatpush1.msra.mxu0 0.0
    %2453 = vmatprep.subr.mxu0 0.0
    %2454 = vmatpush1.msra.mxu0 0.0
    %2455 = vmatprep.subr.mxu0 0.0
    %2456 = vmatpush1.msra.mxu0 0.0
    %2457 = vmatprep.subr.mxu0 0.0
    %2458 = vmatpush1.msra.mxu0 0.0
    %2459 = vmatprep.subr.mxu0 0.0
    %2460 = vmatpush1.msra.mxu0 0.0
    %2461 = vmatprep.subr.mxu0 0.0
    %2462 = vmatpush1.msra.mxu0 0.0
    %2463 = vmatprep.subr.mxu0 0.0
    %2464 = vmatpush1.msra.mxu0 0.0
    %2465 = vmatprep.subr.mxu0 0.0
    %2466 = vmatpush1.msra.mxu0 0.0
    %2467 = vmatprep.subr.mxu0 0.0
    %2468 = vmatpush1.msra.mxu0 0.0
    %2469 = vmatprep.subr.mxu0 0.0
    %2470 = vmatpush1.msra.mxu0 0.0
    %2471 = vmatprep.subr.mxu0 0.0
    %2472 = vmatpush1.msra.mxu0 0.0
    %2473 = vmatprep.subr.mxu0 0.0
    %2474 = vmatpush1.msra.mxu0 0.0
    %2475 = vmatprep.subr.mxu0 0.0
    %2476 = vmatpush1.msra.mxu0 0.0
    %2477 = vmatprep.subr.mxu0 0.0
    %2478 = vmatpush1.msra.mxu0 0.0
    %2479 = vmatprep.subr.mxu0 0.0
    %2480 = vmatpush1.msra.mxu0 0.0
    %2481 = vmatprep.mubr.f32.mxu0 0.0
    %v2482 = vand.u32 %v2407, 4294901760
    %v2483 = vsub.f32 %v2407, %v2482
    %v2484 = vand.u32 %v2483, 4294901760
    %v2485 = vsub.f32 %v2483, %v2484
    %v2486 = vand.u32 %v2485, 4294901760
    %2487 = vmatmul.mubr.f32.gmra.mrb[0].mxu0 %v2486
    %v2488 = vpop.f32.mrb[0].mxu0
    %v2489 = vadd.f32 0.0, %v2488
    %v2490 = vpop.f32.mrb[0].mxu0
    %v2491 = vadd.f32 0.0, %v2490
    %2492 = vdwg.mxu0
    %v2493 = vand.u32 %v2413, 4294901760
    %v2494 = vsub.f32 %v2413, %v2493
    %v2495 = vand.u32 %v2494, 4294901760
    %v2496 = vsub.f32 %v2494, %v2495
    %v2497 = vand.u32 %v2496, 4294901760
    %2498 = vmatprep.subr.mxu0 %v2497
    %v2499 = vand.u32 %v2410, 4294901760
    %v2500 = vsub.f32 %v2410, %v2499
    %v2501 = vand.u32 %v2500, 4294901760
    %v2502 = vsub.f32 %v2500, %v2501
    %v2503 = vand.u32 %v2502, 4294901760
    %2504 = vmatpush1.msra.mxu0 %v2503
    %2505 = vmatprep.subr.mxu0 0.0
    %2506 = vmatpush1.msra.mxu0 0.0
    %2507 = vmatprep.subr.mxu0 0.0
    %2508 = vmatpush1.msra.mxu0 0.0
    %2509 = vmatprep.subr.mxu0 0.0
    %2510 = vmatpush1.msra.mxu0 0.0
    %2511 = vmatprep.subr.mxu0 0.0
    %2512 = vmatpush1.msra.mxu0 0.0
    %2513 = vmatprep.subr.mxu0 0.0
    %2514 = vmatpush1.msra.mxu0 0.0
    %2515 = vmatprep.subr.mxu0 0.0
    %2516 = vmatpush1.msra.mxu0 0.0
    %2517 = vmatprep.subr.mxu0 0.0
    %2518 = vmatpush1.msra.mxu0 0.0
    %2519 = vmatprep.subr.mxu0 0.0
    %2520 = vmatpush1.msra.mxu0 0.0
    %2521 = vmatprep.subr.mxu0 0.0
    %2522 = vmatpush1.msra.mxu0 0.0
    %2523 = vmatprep.subr.mxu0 0.0
    %2524 = vmatpush1.msra.mxu0 0.0
    %2525 = vmatprep.subr.mxu0 0.0
    %2526 = vmatpush1.msra.mxu0 0.0
    %2527 = vmatprep.subr.mxu0 0.0
    %2528 = vmatpush1.msra.mxu0 0.0
    %2529 = vmatprep.subr.mxu0 0.0
    %2530 = vmatpush1.msra.mxu0 0.0
    %2531 = vmatprep.subr.mxu0 0.0
    %2532 = vmatpush1.msra.mxu0 0.0
    %2533 = vmatprep.subr.mxu0 0.0
    %2534 = vmatpush1.msra.mxu0 0.0
    %2535 = vmatprep.subr.mxu0 0.0
    %2536 = vmatpush1.msra.mxu0 0.0
    %2537 = vmatprep.subr.mxu0 0.0
    %2538 = vmatpush1.msra.mxu0 0.0
    %2539 = vmatprep.subr.mxu0 0.0
    %2540 = vmatpush1.msra.mxu0 0.0
    %2541 = vmatprep.subr.mxu0 0.0
    %2542 = vmatpush1.msra.mxu0 0.0
    %2543 = vmatprep.subr.mxu0 0.0
    %2544 = vmatpush1.msra.mxu0 0.0
    %2545 = vmatprep.subr.mxu0 0.0
    %2546 = vmatpush1.msra.mxu0 0.0
    %2547 = vmatprep.subr.mxu0 0.0
    %2548 = vmatpush1.msra.mxu0 0.0
    %2549 = vmatprep.subr.mxu0 0.0
    %2550 = vmatpush1.msra.mxu0 0.0
    %2551 = vmatprep.subr.mxu0 0.0
    %2552 = vmatpush1.msra.mxu0 0.0
    %2553 = vmatprep.subr.mxu0 0.0
    %2554 = vmatpush1.msra.mxu0 0.0
    %2555 = vmatprep.subr.mxu0 0.0
    %2556 = vmatpush1.msra.mxu0 0.0
    %2557 = vmatprep.subr.mxu0 0.0
    %2558 = vmatpush1.msra.mxu0 0.0
    %2559 = vmatprep.subr.mxu0 0.0
    %2560 = vmatpush1.msra.mxu0 0.0
    %2561 = vmatprep.subr.mxu0 0.0
    %2562 = vmatpush1.msra.mxu0 0.0
    %2563 = vmatprep.subr.mxu0 0.0
    %2564 = vmatpush1.msra.mxu0 0.0
    %2565 = vmatprep.subr.mxu0 0.0
    %2566 = vmatpush1.msra.mxu0 0.0
    %2567 = vmatprep.mubr.f32.mxu0 0.0
    %v2568 = vand.u32 %v2407, 4294901760
    %2569 = vmatmul.mubr.f32.gmra.mrb[0].mxu0 %v2568
    %v2570 = vpop.f32.mrb[0].mxu0
    %v2571 = vadd.f32 %v2489, %v2570
    %v2572 = vpop.f32.mrb[0].mxu0
    %v2573 = vadd.f32 %v2491, %v2572
    %2574 = vdwg.mxu0
    %v2575 = vand.u32 %v2413, 4294901760
    %v2576 = vsub.f32 %v2413, %v2575
    %2577 = vmatprep.subr.mxu0 %v2576
    %v2578 = vand.u32 %v2410, 4294901760
    %v2579 = vsub.f32 %v2410, %v2578
    %2580 = vmatpush1.msra.mxu0 %v2579
    %2581 = vmatprep.subr.mxu0 0.0
    %2582 = vmatpush1.msra.mxu0 0.0
    %2583 = vmatprep.subr.mxu0 0.0
    %2584 = vmatpush1.msra.mxu0 0.0
    %2585 = vmatprep.subr.mxu0 0.0
    %2586 = vmatpush1.msra.mxu0 0.0
    %2587 = vmatprep.subr.mxu0 0.0
    %2588 = vmatpush1.msra.mxu0 0.0
    %2589 = vmatprep.subr.mxu0 0.0
    %2590 = vmatpush1.msra.mxu0 0.0
    %2591 = vmatprep.subr.mxu0 0.0
    %2592 = vmatpush1.msra.mxu0 0.0
    %2593 = vmatprep.subr.mxu0 0.0
    %2594 = vmatpush1.msra.mxu0 0.0
    %2595 = vmatprep.subr.mxu0 0.0
    %2596 = vmatpush1.msra.mxu0 0.0
    %2597 = vmatprep.subr.mxu0 0.0
    %2598 = vmatpush1.msra.mxu0 0.0
    %2599 = vmatprep.subr.mxu0 0.0
    %2600 = vmatpush1.msra.mxu0 0.0
    %2601 = vmatprep.subr.mxu0 0.0
    %2602 = vmatpush1.msra.mxu0 0.0
    %2603 = vmatprep.subr.mxu0 0.0
    %2604 = vmatpush1.msra.mxu0 0.0
    %2605 = vmatprep.subr.mxu0 0.0
    %2606 = vmatpush1.msra.mxu0 0.0
    %2607 = vmatprep.subr.mxu0 0.0
    %2608 = vmatpush1.msra.mxu0 0.0
    %2609 = vmatprep.subr.mxu0 0.0
    %2610 = vmatpush1.msra.mxu0 0.0
    %2611 = vmatprep.subr.mxu0 0.0
    %2612 = vmatpush1.msra.mxu0 0.0
    %2613 = vmatprep.subr.mxu0 0.0
    %2614 = vmatpush1.msra.mxu0 0.0
    %2615 = vmatprep.subr.mxu0 0.0
    %2616 = vmatpush1.msra.mxu0 0.0
    %2617 = vmatprep.subr.mxu0 0.0
    %2618 = vmatpush1.msra.mxu0 0.0
    %2619 = vmatprep.subr.mxu0 0.0
    %2620 = vmatpush1.msra.mxu0 0.0
    %2621 = vmatprep.subr.mxu0 0.0
    %2622 = vmatpush1.msra.mxu0 0.0
    %2623 = vmatprep.subr.mxu0 0.0
    %2624 = vmatpush1.msra.mxu0 0.0
    %2625 = vmatprep.subr.mxu0 0.0
    %2626 = vmatpush1.msra.mxu0 0.0
    %2627 = vmatprep.subr.mxu0 0.0
    %2628 = vmatpush1.msra.mxu0 0.0
    %2629 = vmatprep.subr.mxu0 0.0
    %2630 = vmatpush1.msra.mxu0 0.0
    %2631 = vmatprep.subr.mxu0 0.0
    %2632 = vmatpush1.msra.mxu0 0.0
    %2633 = vmatprep.subr.mxu0 0.0
    %2634 = vmatpush1.msra.mxu0 0.0
    %2635 = vmatprep.subr.mxu0 0.0
    %2636 = vmatpush1.msra.mxu0 0.0
    %2637 = vmatprep.subr.mxu0 0.0
    %2638 = vmatpush1.msra.mxu0 0.0
    %2639 = vmatprep.subr.mxu0 0.0
    %2640 = vmatpush1.msra.mxu0 0.0
    %2641 = vmatprep.subr.mxu0 0.0
    %2642 = vmatpush1.msra.mxu0 0.0
    %2643 = vmatprep.mubr.f32.mxu0 0.0
    %v2644 = vand.u32 %v2407, 4294901760
    %v2645 = vsub.f32 %v2407, %v2644
    %2646 = vmatmul.mubr.f32.gmra.mrb[0].mxu0 %v2645
    %v2647 = vpop.f32.mrb[0].mxu0
    %v2648 = vadd.f32 %v2571, %v2647
    %v2649 = vpop.f32.mrb[0].mxu0
    %v2650 = vadd.f32 %v2573, %v2649
    %2651 = vdwg.mxu0
    %v2652 = vand.u32 %v2413, 4294901760
    %2653 = vmatprep.subr.mxu0 %v2652
    %v2654 = vand.u32 %v2410, 4294901760
    %2655 = vmatpush1.msra.mxu0 %v2654
    %2656 = vmatprep.subr.mxu0 0.0
    %2657 = vmatpush1.msra.mxu0 0.0
    %2658 = vmatprep.subr.mxu0 0.0
    %2659 = vmatpush1.msra.mxu0 0.0
    %2660 = vmatprep.subr.mxu0 0.0
    %2661 = vmatpush1.msra.mxu0 0.0
    %2662 = vmatprep.subr.mxu0 0.0
    %2663 = vmatpush1.msra.mxu0 0.0
    %2664 = vmatprep.subr.mxu0 0.0
    %2665 = vmatpush1.msra.mxu0 0.0
    %2666 = vmatprep.subr.mxu0 0.0
    %2667 = vmatpush1.msra.mxu0 0.0
    %2668 = vmatprep.subr.mxu0 0.0
    %2669 = vmatpush1.msra.mxu0 0.0
    %2670 = vmatprep.subr.mxu0 0.0
    %2671 = vmatpush1.msra.mxu0 0.0
    %2672 = vmatprep.subr.mxu0 0.0
    %2673 = vmatpush1.msra.mxu0 0.0
    %2674 = vmatprep.subr.mxu0 0.0
    %2675 = vmatpush1.msra.mxu0 0.0
    %2676 = vmatprep.subr.mxu0 0.0
    %2677 = vmatpush1.msra.mxu0 0.0
    %2678 = vmatprep.subr.mxu0 0.0
    %2679 = vmatpush1.msra.mxu0 0.0
    %2680 = vmatprep.subr.mxu0 0.0
    %2681 = vmatpush1.msra.mxu0 0.0
    %2682 = vmatprep.subr.mxu0 0.0
    %2683 = vmatpush1.msra.mxu0 0.0
    %2684 = vmatprep.subr.mxu0 0.0
    %2685 = vmatpush1.msra.mxu0 0.0
    %2686 = vmatprep.subr.mxu0 0.0
    %2687 = vmatpush1.msra.mxu0 0.0
    %2688 = vmatprep.subr.mxu0 0.0
    %2689 = vmatpush1.msra.mxu0 0.0
    %2690 = vmatprep.subr.mxu0 0.0
    %2691 = vmatpush1.msra.mxu0 0.0
    %2692 = vmatprep.subr.mxu0 0.0
    %2693 = vmatpush1.msra.mxu0 0.0
    %2694 = vmatprep.subr.mxu0 0.0
    %2695 = vmatpush1.msra.mxu0 0.0
    %2696 = vmatprep.subr.mxu0 0.0
    %2697 = vmatpush1.msra.mxu0 0.0
    %2698 = vmatprep.subr.mxu0 0.0
    %2699 = vmatpush1.msra.mxu0 0.0
    %2700 = vmatprep.subr.mxu0 0.0
    %2701 = vmatpush1.msra.mxu0 0.0
    %2702 = vmatprep.subr.mxu0 0.0
    %2703 = vmatpush1.msra.mxu0 0.0
    %2704 = vmatprep.subr.mxu0 0.0
    %2705 = vmatpush1.msra.mxu0 0.0
    %2706 = vmatprep.subr.mxu0 0.0
    %2707 = vmatpush1.msra.mxu0 0.0
    %2708 = vmatprep.subr.mxu0 0.0
    %2709 = vmatpush1.msra.mxu0 0.0
    %2710 = vmatprep.subr.mxu0 0.0
    %2711 = vmatpush1.msra.mxu0 0.0
    %2712 = vmatprep.subr.mxu0 0.0
    %2713 = vmatpush1.msra.mxu0 0.0
    %2714 = vmatprep.subr.mxu0 0.0
    %2715 = vmatpush1.msra.mxu0 0.0
    %2716 = vmatprep.subr.mxu0 0.0
    %2717 = vmatpush1.msra.mxu0 0.0
    %2718 = vmatprep.mubr.f32.mxu0 0.0
    %v2719 = vand.u32 %v2407, 4294901760
    %v2720 = vsub.f32 %v2407, %v2719
    %v2721 = vand.u32 %v2720, 4294901760
    %2722 = vmatmul.mubr.f32.gmra.mrb[0].mxu0 %v2721
    %v2723 = vpop.f32.mrb[0].mxu0
    %v2724 = vadd.f32 %v2648, %v2723
    %v2725 = vpop.f32.mrb[0].mxu0
    %v2726 = vadd.f32 %v2650, %v2725
    %2727 = vdwg.mxu0
    %v2728 = vand.u32 %v2413, 4294901760
    %v2729 = vsub.f32 %v2413, %v2728
    %v2730 = vand.u32 %v2729, 4294901760
    %2731 = vmatprep.subr.mxu0 %v2730
    %v2732 = vand.u32 %v2410, 4294901760
    %v2733 = vsub.f32 %v2410, %v2732
    %v2734 = vand.u32 %v2733, 4294901760
    %2735 = vmatpush1.msra.mxu0 %v2734
    %2736 = vmatprep.subr.mxu0 0.0
    %2737 = vmatpush1.msra.mxu0 0.0
    %2738 = vmatprep.subr.mxu0 0.0
    %2739 = vmatpush1.msra.mxu0 0.0
    %2740 = vmatprep.subr.mxu0 0.0
    %2741 = vmatpush1.msra.mxu0 0.0
    %2742 = vmatprep.subr.mxu0 0.0
    %2743 = vmatpush1.msra.mxu0 0.0
    %2744 = vmatprep.subr.mxu0 0.0
    %2745 = vmatpush1.msra.mxu0 0.0
    %2746 = vmatprep.subr.mxu0 0.0
    %2747 = vmatpush1.msra.mxu0 0.0
    %2748 = vmatprep.subr.mxu0 0.0
    %2749 = vmatpush1.msra.mxu0 0.0
    %2750 = vmatprep.subr.mxu0 0.0
    %2751 = vmatpush1.msra.mxu0 0.0
    %2752 = vmatprep.subr.mxu0 0.0
    %2753 = vmatpush1.msra.mxu0 0.0
    %2754 = vmatprep.subr.mxu0 0.0
    %2755 = vmatpush1.msra.mxu0 0.0
    %2756 = vmatprep.subr.mxu0 0.0
    %2757 = vmatpush1.msra.mxu0 0.0
    %2758 = vmatprep.subr.mxu0 0.0
    %2759 = vmatpush1.msra.mxu0 0.0
    %2760 = vmatprep.subr.mxu0 0.0
    %2761 = vmatpush1.msra.mxu0 0.0
    %2762 = vmatprep.subr.mxu0 0.0
    %2763 = vmatpush1.msra.mxu0 0.0
    %2764 = vmatprep.subr.mxu0 0.0
    %2765 = vmatpush1.msra.mxu0 0.0
    %2766 = vmatprep.subr.mxu0 0.0
    %2767 = vmatpush1.msra.mxu0 0.0
    %2768 = vmatprep.subr.mxu0 0.0
    %2769 = vmatpush1.msra.mxu0 0.0
    %2770 = vmatprep.subr.mxu0 0.0
    %2771 = vmatpush1.msra.mxu0 0.0
    %2772 = vmatprep.subr.mxu0 0.0
    %2773 = vmatpush1.msra.mxu0 0.0
    %2774 = vmatprep.subr.mxu0 0.0
    %2775 = vmatpush1.msra.mxu0 0.0
    %2776 = vmatprep.subr.mxu0 0.0
    %2777 = vmatpush1.msra.mxu0 0.0
    %2778 = vmatprep.subr.mxu0 0.0
    %2779 = vmatpush1.msra.mxu0 0.0
    %2780 = vmatprep.subr.mxu0 0.0
    %2781 = vmatpush1.msra.mxu0 0.0
    %2782 = vmatprep.subr.mxu0 0.0
    %2783 = vmatpush1.msra.mxu0 0.0
    %2784 = vmatprep.subr.mxu0 0.0
    %2785 = vmatpush1.msra.mxu0 0.0
    %2786 = vmatprep.subr.mxu0 0.0
    %2787 = vmatpush1.msra.mxu0 0.0
    %2788 = vmatprep.subr.mxu0 0.0
    %2789 = vmatpush1.msra.mxu0 0.0
    %2790 = vmatprep.subr.mxu0 0.0
    %2791 = vmatpush1.msra.mxu0 0.0
    %2792 = vmatprep.subr.mxu0 0.0
    %2793 = vmatpush1.msra.mxu0 0.0
    %2794 = vmatprep.subr.mxu0 0.0
    %2795 = vmatpush1.msra.mxu0 0.0
    %2796 = vmatprep.subr.mxu0 0.0
    %2797 = vmatpush1.msra.mxu0 0.0
    %2798 = vmatprep.mubr.f32.mxu0 0.0
    %v2799 = vand.u32 %v2407, 4294901760
    %2800 = vmatmul.mubr.f32.gmra.mrb[0].mxu0 %v2799
    %v2801 = vpop.f32.mrb[0].mxu0
    %v2802 = vadd.f32 %v2724, %v2801
    %v2803 = vpop.f32.mrb[0].mxu0
    %v2804 = vadd.f32 %v2726, %v2803
    %2805 = vdwg.mxu0
    %v2806 = vand.u32 %v2413, 4294901760
    %2807 = vmatprep.subr.mxu0 %v2806
    %v2808 = vand.u32 %v2410, 4294901760
    %2809 = vmatpush1.msra.mxu0 %v2808
    %2810 = vmatprep.subr.mxu0 0.0
    %2811 = vmatpush1.msra.mxu0 0.0
    %2812 = vmatprep.subr.mxu0 0.0
    %2813 = vmatpush1.msra.mxu0 0.0
    %2814 = vmatprep.subr.mxu0 0.0
    %2815 = vmatpush1.msra.mxu0 0.0
    %2816 = vmatprep.subr.mxu0 0.0
    %2817 = vmatpush1.msra.mxu0 0.0
    %2818 = vmatprep.subr.mxu0 0.0
    %2819 = vmatpush1.msra.mxu0 0.0
    %2820 = vmatprep.subr.mxu0 0.0
    %2821 = vmatpush1.msra.mxu0 0.0
    %2822 = vmatprep.subr.mxu0 0.0
    %2823 = vmatpush1.msra.mxu0 0.0
    %2824 = vmatprep.subr.mxu0 0.0
    %2825 = vmatpush1.msra.mxu0 0.0
    %2826 = vmatprep.subr.mxu0 0.0
    %2827 = vmatpush1.msra.mxu0 0.0
    %2828 = vmatprep.subr.mxu0 0.0
    %2829 = vmatpush1.msra.mxu0 0.0
    %2830 = vmatprep.subr.mxu0 0.0
    %2831 = vmatpush1.msra.mxu0 0.0
    %2832 = vmatprep.subr.mxu0 0.0
    %2833 = vmatpush1.msra.mxu0 0.0
    %2834 = vmatprep.subr.mxu0 0.0
    %2835 = vmatpush1.msra.mxu0 0.0
    %2836 = vmatprep.subr.mxu0 0.0
    %2837 = vmatpush1.msra.mxu0 0.0
    %2838 = vmatprep.subr.mxu0 0.0
    %2839 = vmatpush1.msra.mxu0 0.0
    %2840 = vmatprep.subr.mxu0 0.0
    %2841 = vmatpush1.msra.mxu0 0.0
    %2842 = vmatprep.subr.mxu0 0.0
    %2843 = vmatpush1.msra.mxu0 0.0
    %2844 = vmatprep.subr.mxu0 0.0
    %2845 = vmatpush1.msra.mxu0 0.0
    %2846 = vmatprep.subr.mxu0 0.0
    %2847 = vmatpush1.msra.mxu0 0.0
    %2848 = vmatprep.subr.mxu0 0.0
    %2849 = vmatpush1.msra.mxu0 0.0
    %2850 = vmatprep.subr.mxu0 0.0
    %2851 = vmatpush1.msra.mxu0 0.0
    %2852 = vmatprep.subr.mxu0 0.0
    %2853 = vmatpush1.msra.mxu0 0.0
    %2854 = vmatprep.subr.mxu0 0.0
    %2855 = vmatpush1.msra.mxu0 0.0
    %2856 = vmatprep.subr.mxu0 0.0
    %2857 = vmatpush1.msra.mxu0 0.0
    %2858 = vmatprep.subr.mxu0 0.0
    %2859 = vmatpush1.msra.mxu0 0.0
    %2860 = vmatprep.subr.mxu0 0.0
    %2861 = vmatpush1.msra.mxu0 0.0
    %2862 = vmatprep.subr.mxu0 0.0
    %2863 = vmatpush1.msra.mxu0 0.0
    %2864 = vmatprep.subr.mxu0 0.0
    %2865 = vmatpush1.msra.mxu0 0.0
    %2866 = vmatprep.subr.mxu0 0.0
    %2867 = vmatpush1.msra.mxu0 0.0
    %2868 = vmatprep.subr.mxu0 0.0
    %2869 = vmatpush1.msra.mxu0 0.0
    %2870 = vmatprep.subr.mxu0 0.0
    %2871 = vmatpush1.msra.mxu0 0.0
    %2872 = vmatprep.mubr.f32.mxu0 0.0
    %v2873 = vand.u32 %v2407, 4294901760
    %2874 = vmatmul.mubr.f32.gmra.mrb[0].mxu0 %v2873
    %v2875 = vpop.f32.mrb[0].mxu0
    %v2876 = vadd.f32 %v2802, %v2875
    %v2877 = vpop.f32.mrb[0].mxu0
    %v2878 = vadd.f32 %v2804, %v2877
    %2879 = vdwg.mxu0
    %vm2880 = vcmp.ge.s32.totalorder %v42, 0
    %vm2881 = vcmp.ge.s32.totalorder %v43, 0
    %vm2882 = vcmp.lt.s32.totalorder %v42, 4
    %vm2883 = vcmp.lt.s32.totalorder %v43, 4
    %vm2884 = vmand %vm2880, %vm2882
    %vm2885 = vmand %vm2881, %vm2883
    %v2886 = vsel %vm2884, 1, 0
    %v2887 = vsel %vm2885, 1, 0
    %v2888 = vlaneseq
    %v2889 = vshrl.u32 %v2888, 7
    %v2890 = vsub.s32 0, %v2889
    %v2891 = vrot.slane %v2886, %v2890
    %v2892 = vlaneseq
    %v2893 = vshrl.u32 %v2892, 7
    %v2894 = vsub.s32 1, %v2893
    %v2895 = vrot.slane %v2886, %v2894
    %v2896 = vlaneseq
    %v2897 = vshrl.u32 %v2896, 7
    %v2898 = vsub.s32 0, %v2897
    %v2899 = vrot.slane %v2887, %v2898
    %v2900 = vlaneseq
    %v2901 = vshrl.u32 %v2900, 7
    %v2902 = vsub.s32 1, %v2901
    %v2903 = vrot.slane %v2887, %v2902
    %vm2904 = vcmp.eq.s32.totalorder %v2891, 1
    %vm2905 = vcmp.eq.s32.totalorder %v2895, 1
    %vm2906 = vcmp.eq.s32.totalorder %v2899, 1
    %vm2907 = vcmp.eq.s32.totalorder %v2903, 1
    %v2908 = vsel %vm2904, %v2402, %v40
    %v2909 = vsel %vm2905, %v2404, %v75
    %v2910 = vsel %vm2906, %v2876, %v41
    %v2911 = vsel %vm2907, %v2878, %v550
    %v2916 = vcombine.low %v2908, %v2909
    %v2917 = vcombine.low %v2910, %v2911
    %2920 = vst [vmem:[#allocation7] sm:$0xff] %v2916
    %2921 = vst [vmem:[#allocation7 + $0x8] sm:$0xff] %v2917
    // Predicated region
    $region18: #{tpu_custom_call.1} parent=1 // pred_check
      _
    $region19: #{tpu_custom_call.1} parent=1 // pred_check_branch
      %2923 = sbr.rel (0) target = $region21
    $region20: #{tpu_custom_call.1} parent=1 // pred_region
      %s2925 = ssub.s32 256, 256
      %2926 = vsyncadd [#allocation4], %s2925
      %s2927 = sshll.u32 [#allocation7], 4
      %s2928 = int_to_ptr.vmem [resolvable:$true] %s2927
      %2933 = dma.vmem_to_hbm [thread:$0]  %s2928, 256, %s2, [#allocation4], 128, 128, 8
    $region21: #{tpu_custom_call.1} parent=1 // pred_fallthru
      _
    // Predicated region
    $region22: #{tpu_custom_call.1} parent=1 // pred_check
      _
    $region23: #{tpu_custom_call.1} parent=1 // pred_check_branch
      %2935 = sbr.rel (0) target = $region25
    $region24: #{tpu_custom_call.1} parent=1 // pred_region
      %2936 = dma.done [#allocation4], 256
    $region25: #{tpu_custom_call.1} parent=1 // pred_fallthru
      _
    %2937 = vsyncpa [#allocation3], 1
    %2938 = vsyncpa [#allocation6], 1
    %2939 = vsyncpa [#allocation4], 1

</llo_original>
